<compile_context>
chip_gen: v7x
topology: tpu7x:2x2x1
jax: 0.10.0
libtpu: 0.0.40
codegen_flags: <defaults>
</compile_context>

<pallas_src>
import jax
import jax.numpy as jnp
import numpy as np
from jax.experimental import pallas as pl
from jax.experimental.pallas import tpu as pltpu


def upconv_kernel(x_ref, w_ref, b_ref, o_ref):
    """One grid step: Bb images x TI original rows -> 2*TI output rows each.

    x_ref: (Bb, 1, TI+2, W*Cin)    original rows + 1-row edge halo, (col, cin) lanes
    w_ref: (2, 2, W*Cin, Wo*Cout)  folded weights [phase, row-tap, (col,cin), (ocol,cout)]
    b_ref: (1, Wo*Cout)            bias tiled over output columns (f32)
    o_ref: (Bb, 2, TI, Wo*Cout)    output [image, phase, row, (ocol, cout)]
    """
    Bb = o_ref.shape[0]
    TI = o_ref.shape[2]
    bias = b_ref[...]                                        # (1, N) f32, VPU add
    # Hoist the 4 weight loads out of the (static) loops below.
    w = [[w_ref[a, p] for p in range(2)] for a in range(2)]  # each (WC, N)

    for b in range(Bb):                 # static unroll over images in this step
        for a in range(2):              # even / odd output-row phase
            # Two accumulating MXU dots (no LHS concat copy).
            acc = jnp.dot(x_ref[b, 0, pl.ds(a, TI), :], w[a][0],
                          preferred_element_type=jnp.float32)
            acc = acc + jnp.dot(x_ref[b, 0, pl.ds(a + 1, TI), :], w[a][1],
                                preferred_element_type=jnp.float32)
            acc = acc + bias
            o_ref[b, a] = jnp.maximum(acc, 0.0).astype(o_ref.dtype)


def _fold_weights(weight, W, mxu_dtype):
    """Fold x2-nearest upsample + reflect pad + 3x3 conv into per-phase,
    per-row-tap (W*Cin, 2W*Cout) matrices."""
    Cout, Cin, _, _ = weight.shape
    Wo = 2 * W
    w_t = jnp.transpose(weight, (2, 3, 1, 0))          # (dy, dx, ci, co)
    # Row fold F[a, p, dy]: upsampled row-tap dy of output row 2i+a reads
    # original row (i + a + p - 1), p in {0,1}; edge rows come from the halo.
    F = np.zeros((2, 2, 3), np.float32)
    F[0, 0, 0] = 1.0; F[0, 1, 1] = 1.0; F[0, 1, 2] = 1.0
    F[1, 0, 0] = 1.0; F[1, 0, 1] = 1.0; F[1, 1, 2] = 1.0
    # Column scatter S[dx, j, c]: output col c, tap dx reads original col
    # j = clip((c+dx-1)//2, 0, W-1)   (x2 nearest upsample + reflect pad).
    S = np.zeros((3, W, Wo), np.float32)
    cols = np.arange(Wo)
    for dx in range(3):
        src = np.clip((cols + dx - 1) // 2, 0, W - 1)
        S[dx, src, cols] = 1.0
    Wf = jnp.einsum('apd,dxio,xjc->apjico', jnp.asarray(F), w_t, jnp.asarray(S))
    return Wf.reshape(2, 2, W * Cin, Wo * Cout).astype(mxu_dtype)


def upconv_forward(x_nchw, weight, bias, scale=2, row_tile=128,
                   mxu_dtype=jnp.bfloat16):
    """x_nchw: (B, Cin, H, W); weight: (Cout, Cin, 3, 3); bias: (Cout,)."""
    if scale != 2:
        # TODO(synk): the fused upsample folding is specialized to scale=2 (the
        # module default); other scales need a different weight fold.
        raise NotImplementedError("UpConv Pallas kernel supports scale=2 only")

    B, Cin, H, W = x_nchw.shape
    Cout = weight.shape[0]
    Ho, Wo = 2 * H, 2 * W
    WC = W * Cin
    N = Wo * Cout
    out_dtype = x_nchw.dtype

    # ---- row tiling: biggest tile that divides H (large M per MXU dot) ----
    TI = min(row_tile, H)
    if H % TI != 0 or (TI != H and TI % 8 != 0):
        TI = H
    n_tiles = H // TI
    # v7x has 2 TensorCores: avoid a (1, 1) grid for single-image inputs.
    if B == 1 and n_tiles == 1 and H >= 16 and H % 16 == 0:
        TI = H // 2
        n_tiles = 2
    # Fold several images into one grid step (~128 output rows of MXU work per
    # step) without dropping below 2 grid steps when 2 are possible.
    target_bb = max(1, 128 // TI)
    min_steps = min(2, B * n_tiles)
    Bb = 1
    for d in range(1, B + 1):
        if B % d == 0 and d <= target_bb and (B // d) * n_tiles >= min_steps:
            Bb = d
    n_btiles = B // Bb

    # ---- input prep on the ORIGINAL-size tensor only (the 4x upsampled/padded
    #      image is never written to HBM) ----
    x_rows = jnp.transpose(x_nchw, (0, 2, 3, 1)).reshape(B, H, WC)   # (B, H, W*Cin)
    # 1-row edge pad == reflect pad of the x2-upsampled image in the row dir.
    xe = jnp.concatenate([x_rows[:, :1], x_rows, x_rows[:, -1:]], axis=1)  # (B, H+2, WC)
    if n_tiles == 1:
        in_x = xe[:, None]                                # no halo gather needed
    else:
        # Per-tile rows with a 2-row halo so BlockSpecs never overlap.
        # TODO(synk): for very large H, keep xe in HBM (memory_space=pl.ANY) and
        #   DMA the [t*TI, t*TI+TI+2) row window manually to avoid this copy.
        row_idx = np.arange(n_tiles)[:, None] * TI + np.arange(TI + 2)[None, :]
        in_x = xe[:, row_idx, :]
    in_x = in_x.astype(mxu_dtype)                         # (B, n_tiles, TI+2, WC)

    Wf = _fold_weights(weight, W, mxu_dtype)              # (2, 2, WC, N)
    bias_row = jnp.tile(bias.astype(jnp.float32), Wo).reshape(1, N)

    # ---- VMEM budget & scheduler hints ----
    mxu_isz = np.dtype(mxu_dtype).itemsize
    out_isz = np.dtype(out_dtype).itemsize
    x_blk = Bb * (TI + 2) * WC * mxu_isz
    o_blk = Bb * 2 * TI * N * out_isz
    resident = 2 * x_blk + 2 * o_blk + int(Wf.size) * mxu_isz + N * 4
    # <= 48 MiB is safe on every generation (v7x: 64 MiB physical VMEM);
    # v5e/v6e (128 MiB) could go to ~100 MiB if larger tiles are ever needed.
    vmem_limit = int(min(max(2 * resident + (4 << 20), 32 << 20), 48 << 20))
    # FLOPs the dense fold actually executes (not the logical 3x3-conv count).
    flops = 2 * B * Ho * (2 * WC) * N
    bytes_accessed = int(in_x.size * mxu_isz + Wf.size * mxu_isz
                         + bias_row.size * 4 + B * 2 * H * N * out_isz)

    def _build(single_buffer_consts):
        const_kw = ({"pipeline_mode": pl.Buffered(1)} if single_buffer_consts
                    else {})
        return pl.pallas_call(
            upconv_kernel,
            out_shape=jax.ShapeDtypeStruct((B, 2, H, N), out_dtype),
            grid_spec=pltpu.PrefetchScalarGridSpec(
                num_scalar_prefetch=0,
                grid=(n_btiles, n_tiles),
                in_specs=[
                    pl.BlockSpec((Bb, 1, TI + 2, WC), lambda bb, t: (bb, t, 0, 0)),
                    # Grid-invariant folded weights / bias.
                    pl.BlockSpec((2, 2, WC, N), lambda bb, t: (0, 0, 0, 0),
                                 **const_kw),
                    pl.BlockSpec((1, N), lambda bb, t: (0, 0), **const_kw),
                ],
                out_specs=pl.BlockSpec((Bb, 2, TI, N), lambda bb, t: (bb, 0, t, 0)),
            ),
            compiler_params=pltpu.CompilerParams(
                dimension_semantics=("parallel", "parallel"),
                vmem_limit_bytes=vmem_limit),
            cost_estimate=pl.CostEstimate(
                flops=flops, transcendentals=0, bytes_accessed=bytes_accessed),
        )

    try:
        # Single-buffer the grid-invariant operands (halves their VMEM
        # residency; matters most on v7x's 64 MiB VMEM).
        out_k = _build(True)(in_x, Wf, bias_row)
    except Exception:
        # Fallback for jax versions without BlockSpec.pipeline_mode support.
        out_k = _build(False)(in_x, Wf, bias_row)

    # (B, 2, H, Wo*Cout) -> NCHW.  The module boundary requires NCHW, so one
    # layout pass is unavoidable; if downstream accepted NHWC this transpose
    # could be replaced by a cheaper (B, H, 2, Wo, Cout) -> NHWC interleave.
    out = out_k.reshape(B, 2, H, Wo, Cout)
    out = jnp.transpose(out, (0, 4, 2, 1, 3))             # (B, Cout, H, 2, Wo)
    return out.reshape(B, Cout, Ho, Wo)


def upconv_reference(x_nchw, weight, bias, scale=2):
    """Pure-JAX reference mirroring the PyTorch module."""
    x_up = jnp.repeat(jnp.repeat(x_nchw, scale, axis=2), scale, axis=3)
    x_pad = jnp.pad(x_up, ((0, 0), (0, 0), (1, 1), (1, 1)), mode="reflect")
    out = jax.lax.conv_general_dilated(
        x_pad, weight, window_strides=(1, 1), padding="VALID",
        dimension_numbers=("NCHW", "OIHW", "NCHW"))
    return jnp.maximum(out + bias[None, :, None, None], 0.0)


if __name__ == "__main__":
    def make_inputs(key, B, Cin, H, W, Cout):
        kx, kw, kb = jax.random.split(key, 3)
        x = jax.random.normal(kx, (B, Cin, H, W), dtype=jnp.float32)
        bound = 1.0 / np.sqrt(Cin * 3 * 3)
        w = jax.random.uniform(kw, (Cout, Cin, 3, 3), minval=-bound,
                               maxval=bound, dtype=jnp.float32)
        b = jax.random.uniform(kb, (Cout,), minval=-bound, maxval=bound,
                               dtype=jnp.float32)
        return x, w, b

    key = jax.random.PRNGKey(0)
    configs = [
        # (B, Cin, H, W, Cout)
        (2, 4, 16, 16, 8),   # primary small shape (batch=2, channels=4, 16x16)
        (8, 2, 8, 16, 4),    # exercises batch folding (Bb > 1 per grid step)
        (1, 4, 32, 16, 8),   # exercises the >=2-row-tile split + halo gather
    ]
    for (B, Cin, H, W, Cout) in configs:
        key, sub = jax.random.split(key)
        x, w, b = make_inputs(sub, B, Cin, H, W, Cout)
        ref = jax.block_until_ready(upconv_reference(x, w, b))

        # Production path: bf16 MXU operands, f32 accumulation.
        out_bf16 = jax.block_until_ready(
            upconv_forward(x, w, b, mxu_dtype=jnp.bfloat16))
        assert out_bf16.shape == (B, Cout, 2 * H, 2 * W), out_bf16.shape
        np.testing.assert_allclose(np.asarray(out_bf16), np.asarray(ref),
                                   rtol=3e-2, atol=3e-2)

        # Exactness path: f32 MXU operands.
        out_f32 = jax.block_until_ready(
            upconv_forward(x, w, b, mxu_dtype=jnp.float32))
        np.testing.assert_allclose(np.asarray(out_f32), np.asarray(ref),
                                   rtol=1e-4, atol=1e-4)

    print("KERNEL_OK")
</pallas_src>

<mosaic_0001>
module attributes {stable_mosaic.version = 11 : i64} {
  func.func @upconv_kernel(%arg0: i32, %arg1: i32, %arg2: memref<1x1x18x64xbf16, #tpu.memory_space<vmem>>, %arg3: memref<2x2x64x256xbf16, #tpu.memory_space<vmem>>, %arg4: memref<1x256xf32, #tpu.memory_space<vmem>>, %arg5: memref<1x2x16x256xf32, #tpu.memory_space<vmem>>) attributes {dimension_semantics = [#tpu.dimension_semantics<parallel>, #tpu.dimension_semantics<parallel>], iteration_bounds = array<i64: 2, 1>, scalar_prefetch = 0 : i64, scratch_operands = 0 : i64, tpu.core_type = #tpu.core_type<tc>, window_params = [{transform_indices = @transform_0, window_bounds = array<i64: 1, 1, 18, 64>}, {pipeline_mode = #tpu.pipeline_mode<synchronous>, transform_indices = @transform_1, window_bounds = array<i64: 2, 2, 64, 256>}, {pipeline_mode = #tpu.pipeline_mode<synchronous>, transform_indices = @transform_2, window_bounds = array<i64: 1, 256>}, {transform_indices = @transform_3, window_bounds = array<i64: 1, 2, 16, 256>}]} {
    %c0 = arith.constant 0 : index
    %c0_0 = arith.constant 0 : index
    %0 = vector.load %arg4[%c0, %c0_0] : memref<1x256xf32, #tpu.memory_space<vmem>>, vector<1x256xf32>
    %c0_1 = arith.constant 0 : index
    %c0_2 = arith.constant 0 : index
    %c0_3 = arith.constant 0 : index
    %c0_4 = arith.constant 0 : index
    %1 = vector.load %arg3[%c0_1, %c0_2, %c0_3, %c0_4] : memref<2x2x64x256xbf16, #tpu.memory_space<vmem>>, vector<1x1x64x256xbf16>
    %2 = vector.shape_cast %1 : vector<1x1x64x256xbf16> to vector<64x256xbf16>
    %c0_5 = arith.constant 0 : index
    %c1 = arith.constant 1 : index
    %c0_6 = arith.constant 0 : index
    %c0_7 = arith.constant 0 : index
    %3 = vector.load %arg3[%c0_5, %c1, %c0_6, %c0_7] : memref<2x2x64x256xbf16, #tpu.memory_space<vmem>>, vector<1x1x64x256xbf16>
    %4 = vector.shape_cast %3 : vector<1x1x64x256xbf16> to vector<64x256xbf16>
    %c1_8 = arith.constant 1 : index
    %c0_9 = arith.constant 0 : index
    %c0_10 = arith.constant 0 : index
    %c0_11 = arith.constant 0 : index
    %5 = vector.load %arg3[%c1_8, %c0_9, %c0_10, %c0_11] : memref<2x2x64x256xbf16, #tpu.memory_space<vmem>>, vector<1x1x64x256xbf16>
    %6 = vector.shape_cast %5 : vector<1x1x64x256xbf16> to vector<64x256xbf16>
    %c1_12 = arith.constant 1 : index
    %c1_13 = arith.constant 1 : index
    %c0_14 = arith.constant 0 : index
    %c0_15 = arith.constant 0 : index
    %7 = vector.load %arg3[%c1_12, %c1_13, %c0_14, %c0_15] : memref<2x2x64x256xbf16, #tpu.memory_space<vmem>>, vector<1x1x64x256xbf16>
    %8 = vector.shape_cast %7 : vector<1x1x64x256xbf16> to vector<64x256xbf16>
    %c0_16 = arith.constant 0 : index
    %c0_17 = arith.constant 0 : index
    %c0_18 = arith.constant 0 : index
    %c0_19 = arith.constant 0 : index
    %9 = vector.load %arg2[%c0_16, %c0_17, %c0_18, %c0_19] : memref<1x1x18x64xbf16, #tpu.memory_space<vmem>>, vector<1x1x16x64xbf16>
    %10 = vector.shape_cast %9 : vector<1x1x16x64xbf16> to vector<16x64xbf16>
    %cst = arith.constant dense<0.000000e+00> : vector<16x256xf32>
    %11 = tpu.matmul %10, %2, %cst {dimension_numbers = #tpu.dot_dimension_numbers<[1], [0], [0], [1], [0, 0, 1, 1], [], []>} : vector<16x64xbf16>, vector<64x256xbf16>, vector<16x256xf32> -> vector<16x256xf32>
    %c0_20 = arith.constant 0 : index
    %c0_21 = arith.constant 0 : index
    %c1_22 = arith.constant 1 : index
    %c0_23 = arith.constant 0 : index
    %12 = vector.load %arg2[%c0_20, %c0_21, %c1_22, %c0_23] : memref<1x1x18x64xbf16, #tpu.memory_space<vmem>>, vector<1x1x16x64xbf16>
    %13 = vector.shape_cast %12 : vector<1x1x16x64xbf16> to vector<16x64xbf16>
    %cst_24 = arith.constant dense<0.000000e+00> : vector<16x256xf32>
    %14 = tpu.matmul %13, %4, %cst_24 {dimension_numbers = #tpu.dot_dimension_numbers<[1], [0], [0], [1], [0, 0, 1, 1], [], []>} : vector<16x64xbf16>, vector<64x256xbf16>, vector<16x256xf32> -> vector<16x256xf32>
    %15 = arith.addf %11, %14 : vector<16x256xf32>
    %16 = vector.broadcast %0 : vector<1x256xf32> to vector<16x256xf32>
    %17 = arith.addf %15, %16 : vector<16x256xf32>
    %cst_25 = arith.constant 0.000000e+00 : f32
    %18 = vector.broadcast %cst_25 : f32 to vector<16x256xf32>
    %19 = arith.maximumf %17, %18 : vector<16x256xf32>
    %c0_26 = arith.constant 0 : index
    %c0_27 = arith.constant 0 : index
    %c0_28 = arith.constant 0 : index
    %c0_29 = arith.constant 0 : index
    %20 = vector.load %arg5[%c0_26, %c0_27, %c0_28, %c0_29] : memref<1x2x16x256xf32, #tpu.memory_space<vmem>>, vector<1x1x16x256xf32>
    %21 = vector.shape_cast %20 : vector<1x1x16x256xf32> to vector<16x256xf32>
    %22 = vector.shape_cast %19 : vector<16x256xf32> to vector<1x1x16x256xf32>
    tpu.vector_store %arg5[%c0_26, %c0_27, %c0_28, %c0_29], %22 {strides = array<i32>} : memref<1x2x16x256xf32, #tpu.memory_space<vmem>>, vector<1x1x16x256xf32>,
    %c0_30 = arith.constant 0 : index
    %c0_31 = arith.constant 0 : index
    %c1_32 = arith.constant 1 : index
    %c0_33 = arith.constant 0 : index
    %23 = vector.load %arg2[%c0_30, %c0_31, %c1_32, %c0_33] : memref<1x1x18x64xbf16, #tpu.memory_space<vmem>>, vector<1x1x16x64xbf16>
    %24 = vector.shape_cast %23 : vector<1x1x16x64xbf16> to vector<16x64xbf16>
    %cst_34 = arith.constant dense<0.000000e+00> : vector<16x256xf32>
    %25 = tpu.matmul %24, %6, %cst_34 {dimension_numbers = #tpu.dot_dimension_numbers<[1], [0], [0], [1], [0, 0, 1, 1], [], []>} : vector<16x64xbf16>, vector<64x256xbf16>, vector<16x256xf32> -> vector<16x256xf32>
    %c0_35 = arith.constant 0 : index
    %c0_36 = arith.constant 0 : index
    %c2 = arith.constant 2 : index
    %c0_37 = arith.constant 0 : index
    %26 = vector.load %arg2[%c0_35, %c0_36, %c2, %c0_37] : memref<1x1x18x64xbf16, #tpu.memory_space<vmem>>, vector<1x1x16x64xbf16>
    %27 = vector.shape_cast %26 : vector<1x1x16x64xbf16> to vector<16x64xbf16>
    %cst_38 = arith.constant dense<0.000000e+00> : vector<16x256xf32>
    %28 = tpu.matmul %27, %8, %cst_38 {dimension_numbers = #tpu.dot_dimension_numbers<[1], [0], [0], [1], [0, 0, 1, 1], [], []>} : vector<16x64xbf16>, vector<64x256xbf16>, vector<16x256xf32> -> vector<16x256xf32>
    %29 = arith.addf %25, %28 : vector<16x256xf32>
    %30 = vector.broadcast %0 : vector<1x256xf32> to vector<16x256xf32>
    %31 = arith.addf %29, %30 : vector<16x256xf32>
    %cst_39 = arith.constant 0.000000e+00 : f32
    %32 = vector.broadcast %cst_39 : f32 to vector<16x256xf32>
    %33 = arith.maximumf %31, %32 : vector<16x256xf32>
    %c0_40 = arith.constant 0 : index
    %c1_41 = arith.constant 1 : index
    %c0_42 = arith.constant 0 : index
    %c0_43 = arith.constant 0 : index
    %34 = vector.load %arg5[%c0_40, %c1_41, %c0_42, %c0_43] : memref<1x2x16x256xf32, #tpu.memory_space<vmem>>, vector<1x1x16x256xf32>
    %35 = vector.shape_cast %34 : vector<1x1x16x256xf32> to vector<16x256xf32>
    %36 = vector.shape_cast %33 : vector<16x256xf32> to vector<1x1x16x256xf32>
    tpu.vector_store %arg5[%c0_40, %c1_41, %c0_42, %c0_43], %36 {strides = array<i32>} : memref<1x2x16x256xf32, #tpu.memory_space<vmem>>, vector<1x1x16x256xf32>,
    return
  }
  func.func @transform_0(%arg0: i32, %arg1: i32) -> (i32, i32, i32, i32) {
    %c0_i32 = arith.constant 0 : i32
    %c0_i32_0 = arith.constant 0 : i32
    %c0_i32_1 = arith.constant 0 : i32
    return %arg0, %arg1, %c0_i32, %c0_i32_0 : i32, i32, i32, i32
  }
  func.func @transform_1(%arg0: i32, %arg1: i32) -> (i32, i32, i32, i32) {
    %c0_i32 = arith.constant 0 : i32
    %c0_i32_0 = arith.constant 0 : i32
    %c0_i32_1 = arith.constant 0 : i32
    %c0_i32_2 = arith.constant 0 : i32
    %c0_i32_3 = arith.constant 0 : i32
    return %c0_i32, %c0_i32_0, %c0_i32_1, %c0_i32_2 : i32, i32, i32, i32
  }
  func.func @transform_2(%arg0: i32, %arg1: i32) -> (i32, i32) {
    %c0_i32 = arith.constant 0 : i32
    %c0_i32_0 = arith.constant 0 : i32
    %c0_i32_1 = arith.constant 0 : i32
    return %c0_i32, %c0_i32_0 : i32, i32
  }
  func.func @transform_3(%arg0: i32, %arg1: i32) -> (i32, i32, i32, i32) {
    %c0_i32 = arith.constant 0 : i32
    %c0_i32_0 = arith.constant 0 : i32
    %c0_i32_1 = arith.constant 0 : i32
    return %arg0, %c0_i32, %arg1, %c0_i32_0 : i32, i32, i32, i32
  }
}

module attributes {stable_mosaic.version = 11 : i64} {
  func.func @upconv_kernel(%arg0: i32, %arg1: i32, %arg2: memref<1x1x18x64xbf16, #tpu.memory_space<vmem>>, %arg3: memref<2x2x64x256xbf16, #tpu.memory_space<vmem>>, %arg4: memref<1x256xf32, #tpu.memory_space<vmem>>, %arg5: memref<1x2x16x256xf32, #tpu.memory_space<vmem>>) attributes {dimension_semantics = [#tpu.dimension_semantics<parallel>, #tpu.dimension_semantics<parallel>], iteration_bounds = array<i64: 2, 1>, scalar_prefetch = 0 : i64, scratch_operands = 0 : i64, tpu.core_type = #tpu.core_type<tc>, window_params = [{transform_indices = @transform_0, window_bounds = array<i64: 1, 1, 18, 64>}, {pipeline_mode = #tpu.pipeline_mode<synchronous>, transform_indices = @transform_1, window_bounds = array<i64: 2, 2, 64, 256>}, {pipeline_mode = #tpu.pipeline_mode<synchronous>, transform_indices = @transform_2, window_bounds = array<i64: 1, 256>}, {transform_indices = @transform_3, window_bounds = array<i64: 1, 2, 16, 256>}]} {
    %c0 = arith.constant 0 : index
    %c0_0 = arith.constant 0 : index
    %0 = vector.load %arg4[%c0, %c0_0] : memref<1x256xf32, #tpu.memory_space<vmem>>, vector<1x256xf32>
    %c0_1 = arith.constant 0 : index
    %c0_2 = arith.constant 0 : index
    %c0_3 = arith.constant 0 : index
    %c0_4 = arith.constant 0 : index
    %1 = vector.load %arg3[%c0_1, %c0_2, %c0_3, %c0_4] : memref<2x2x64x256xbf16, #tpu.memory_space<vmem>>, vector<1x1x64x256xbf16>
    %2 = vector.shape_cast %1 : vector<1x1x64x256xbf16> to vector<64x256xbf16>
    %c0_5 = arith.constant 0 : index
    %c1 = arith.constant 1 : index
    %c0_6 = arith.constant 0 : index
    %c0_7 = arith.constant 0 : index
    %3 = vector.load %arg3[%c0_5, %c1, %c0_6, %c0_7] : memref<2x2x64x256xbf16, #tpu.memory_space<vmem>>, vector<1x1x64x256xbf16>
    %4 = vector.shape_cast %3 : vector<1x1x64x256xbf16> to vector<64x256xbf16>
    %c1_8 = arith.constant 1 : index
    %c0_9 = arith.constant 0 : index
    %c0_10 = arith.constant 0 : index
    %c0_11 = arith.constant 0 : index
    %5 = vector.load %arg3[%c1_8, %c0_9, %c0_10, %c0_11] : memref<2x2x64x256xbf16, #tpu.memory_space<vmem>>, vector<1x1x64x256xbf16>
    %6 = vector.shape_cast %5 : vector<1x1x64x256xbf16> to vector<64x256xbf16>
    %c1_12 = arith.constant 1 : index
    %c1_13 = arith.constant 1 : index
    %c0_14 = arith.constant 0 : index
    %c0_15 = arith.constant 0 : index
    %7 = vector.load %arg3[%c1_12, %c1_13, %c0_14, %c0_15] : memref<2x2x64x256xbf16, #tpu.memory_space<vmem>>, vector<1x1x64x256xbf16>
    %8 = vector.shape_cast %7 : vector<1x1x64x256xbf16> to vector<64x256xbf16>
    %c0_16 = arith.constant 0 : index
    %c0_17 = arith.constant 0 : index
    %c0_18 = arith.constant 0 : index
    %c0_19 = arith.constant 0 : index
    %9 = vector.load %arg2[%c0_16, %c0_17, %c0_18, %c0_19] : memref<1x1x18x64xbf16, #tpu.memory_space<vmem>>, vector<1x1x16x64xbf16>
    %10 = vector.shape_cast %9 : vector<1x1x16x64xbf16> to vector<16x64xbf16>
    %cst = arith.constant dense<0.000000e+00> : vector<16x256xf32>
    %11 = tpu.matmul %10, %2, %cst {dimension_numbers = #tpu.dot_dimension_numbers<[1], [0], [0], [1], [0, 0, 1, 1], [], []>} : vector<16x64xbf16>, vector<64x256xbf16>, vector<16x256xf32> -> vector<16x256xf32>
    %c0_20 = arith.constant 0 : index
    %c0_21 = arith.constant 0 : index
    %c1_22 = arith.constant 1 : index
    %c0_23 = arith.constant 0 : index
    %12 = vector.load %arg2[%c0_20, %c0_21, %c1_22, %c0_23] : memref<1x1x18x64xbf16, #tpu.memory_space<vmem>>, vector<1x1x16x64xbf16>
    %13 = vector.shape_cast %12 : vector<1x1x16x64xbf16> to vector<16x64xbf16>
    %cst_24 = arith.constant dense<0.000000e+00> : vector<16x256xf32>
    %14 = tpu.matmul %13, %4, %cst_24 {dimension_numbers = #tpu.dot_dimension_numbers<[1], [0], [0], [1], [0, 0, 1, 1], [], []>} : vector<16x64xbf16>, vector<64x256xbf16>, vector<16x256xf32> -> vector<16x256xf32>
    %15 = arith.addf %11, %14 : vector<16x256xf32>
    %16 = vector.broadcast %0 : vector<1x256xf32> to vector<16x256xf32>
    %17 = arith.addf %15, %16 : vector<16x256xf32>
    %cst_25 = arith.constant 0.000000e+00 : f32
    %18 = vector.broadcast %cst_25 : f32 to vector<16x256xf32>
    %19 = arith.maximumf %17, %18 : vector<16x256xf32>
    %c0_26 = arith.constant 0 : index
    %c0_27 = arith.constant 0 : index
    %c0_28 = arith.constant 0 : index
    %c0_29 = arith.constant 0 : index
    %20 = vector.load %arg5[%c0_26, %c0_27, %c0_28, %c0_29] : memref<1x2x16x256xf32, #tpu.memory_space<vmem>>, vector<1x1x16x256xf32>
    %21 = vector.shape_cast %20 : vector<1x1x16x256xf32> to vector<16x256xf32>
    %22 = vector.shape_cast %19 : vector<16x256xf32> to vector<1x1x16x256xf32>
    tpu.vector_store %arg5[%c0_26, %c0_27, %c0_28, %c0_29], %22 {strides = array<i32>} : memref<1x2x16x256xf32, #tpu.memory_space<vmem>>, vector<1x1x16x256xf32>,
    %c0_30 = arith.constant 0 : index
    %c0_31 = arith.constant 0 : index
    %c1_32 = arith.constant 1 : index
    %c0_33 = arith.constant 0 : index
    %23 = vector.load %arg2[%c0_30, %c0_31, %c1_32, %c0_33] : memref<1x1x18x64xbf16, #tpu.memory_space<vmem>>, vector<1x1x16x64xbf16>
    %24 = vector.shape_cast %23 : vector<1x1x16x64xbf16> to vector<16x64xbf16>
    %cst_34 = arith.constant dense<0.000000e+00> : vector<16x256xf32>
    %25 = tpu.matmul %24, %6, %cst_34 {dimension_numbers = #tpu.dot_dimension_numbers<[1], [0], [0], [1], [0, 0, 1, 1], [], []>} : vector<16x64xbf16>, vector<64x256xbf16>, vector<16x256xf32> -> vector<16x256xf32>
    %c0_35 = arith.constant 0 : index
    %c0_36 = arith.constant 0 : index
    %c2 = arith.constant 2 : index
    %c0_37 = arith.constant 0 : index
    %26 = vector.load %arg2[%c0_35, %c0_36, %c2, %c0_37] : memref<1x1x18x64xbf16, #tpu.memory_space<vmem>>, vector<1x1x16x64xbf16>
    %27 = vector.shape_cast %26 : vector<1x1x16x64xbf16> to vector<16x64xbf16>
    %cst_38 = arith.constant dense<0.000000e+00> : vector<16x256xf32>
    %28 = tpu.matmul %27, %8, %cst_38 {dimension_numbers = #tpu.dot_dimension_numbers<[1], [0], [0], [1], [0, 0, 1, 1], [], []>} : vector<16x64xbf16>, vector<64x256xbf16>, vector<16x256xf32> -> vector<16x256xf32>
    %29 = arith.addf %25, %28 : vector<16x256xf32>
    %30 = vector.broadcast %0 : vector<1x256xf32> to vector<16x256xf32>
    %31 = arith.addf %29, %30 : vector<16x256xf32>
    %cst_39 = arith.constant 0.000000e+00 : f32
    %32 = vector.broadcast %cst_39 : f32 to vector<16x256xf32>
    %33 = arith.maximumf %31, %32 : vector<16x256xf32>
    %c0_40 = arith.constant 0 : index
    %c1_41 = arith.constant 1 : index
    %c0_42 = arith.constant 0 : index
    %c0_43 = arith.constant 0 : index
    %34 = vector.load %arg5[%c0_40, %c1_41, %c0_42, %c0_43] : memref<1x2x16x256xf32, #tpu.memory_space<vmem>>, vector<1x1x16x256xf32>
    %35 = vector.shape_cast %34 : vector<1x1x16x256xf32> to vector<16x256xf32>
    %36 = vector.shape_cast %33 : vector<16x256xf32> to vector<1x1x16x256xf32>
    tpu.vector_store %arg5[%c0_40, %c1_41, %c0_42, %c0_43], %36 {strides = array<i32>} : memref<1x2x16x256xf32, #tpu.memory_space<vmem>>, vector<1x1x16x256xf32>,
    return
  }
  func.func @transform_0(%arg0: i32, %arg1: i32) -> (i32, i32, i32, i32) {
    %c0_i32 = arith.constant 0 : i32
    %c0_i32_0 = arith.constant 0 : i32
    %c0_i32_1 = arith.constant 0 : i32
    return %arg0, %arg1, %c0_i32, %c0_i32_0 : i32, i32, i32, i32
  }
  func.func @transform_1(%arg0: i32, %arg1: i32) -> (i32, i32, i32, i32) {
    %c0_i32 = arith.constant 0 : i32
    %c0_i32_0 = arith.constant 0 : i32
    %c0_i32_1 = arith.constant 0 : i32
    %c0_i32_2 = arith.constant 0 : i32
    %c0_i32_3 = arith.constant 0 : i32
    return %c0_i32, %c0_i32_0, %c0_i32_1, %c0_i32_2 : i32, i32, i32, i32
  }
  func.func @transform_2(%arg0: i32, %arg1: i32) -> (i32, i32) {
    %c0_i32 = arith.constant 0 : i32
    %c0_i32_0 = arith.constant 0 : i32
    %c0_i32_1 = arith.constant 0 : i32
    return %c0_i32, %c0_i32_0 : i32, i32
  }
  func.func @transform_3(%arg0: i32, %arg1: i32) -> (i32, i32, i32, i32) {
    %c0_i32 = arith.constant 0 : i32
    %c0_i32_0 = arith.constant 0 : i32
    %c0_i32_1 = arith.constant 0 : i32
    return %arg0, %c0_i32, %arg1, %c0_i32_0 : i32, i32, i32, i32
  }
}

</mosaic_0001>

<llo_original>
// kernel: tpu_custom_call.1
$region0: #{tpu_custom_call.1}
  #allocation0 [shape = 'u32[]', space=smem, size = 0x4, offset = 0x4, fixed_abs, tag = 'smem constant byte address 0x4 - core index']
  #allocation1 [shape = 'u32[144,128]{1,0:T(1,128)}', space=vmem, size = 0x12000, scoped, tag = 'internal scratch']
  %s0 = inlined_call_operand.vmem [shape: bf16[2,1,18,64], index: 0, kind: input, shape index: {}]
  %s1 = inlined_call_operand.hbm [shape: bf16[2,2,64,256], index: 1, kind: input, shape index: {}]
  %s2 = inlined_call_operand.vmem [shape: f32[1,256], index: 2, kind: input, shape index: {}]
  %s3 = inlined_call_operand.hbm [shape: f32[2,2,16,256], index: 3, kind: output, shape index: {}]
  %s4 = sld [smem:[#allocation0]]
  $region49: #{tpu_custom_call.1} parent=0
    _
  %s6 = ssub.s32 1, %s4
  %s7 = scalar_select 0, %s6, %s4
  $region1: #{tpu_custom_call.1} parent=0
    #allocation2 [shape = 'u8[131072]{0}', space=vmem, size = 0x20000, scoped, tag = 'input window, operand 1, single buffered']
    #allocation3 [shape = 's32[2]{0}', space=sflag, size = 0x8, scoped, tag = 'scoped memory for tpu_custom_call.1']
    #allocation4 [shape = 's32[2]{0}', space=sflag, size = 0x8, scoped, tag = 'scoped memory for tpu_custom_call.1']
    #allocation5 [shape = 'u8[65536]{0}', space=vmem, size = 0x10000, scoped, tag = 'output window, operand 0']
    %8 = vsyncpa [#allocation3], 0
    %9 = vsyncpa [#allocation4], 0
    %s10 = scalar_lea.sflag [#allocation4], 1
    %11 = vsyncpa %s10, 0
    loop: start=0, step=1, limit=4
    $region2: #{tpu_custom_call.1} parent=1 // loop_pre_header
      _
    $region3: #{tpu_custom_call.1} parent=1 // loop_header
      %s13 = sphi 0, %s17
      %p14 = scmp.ge.s32.totalorder %s13, 4
      %s20 = sphi 0, %s32
      %s21 = sphi 0, %s28
      %s22 = sphi 0, %s20
      %s23 = sphi 0, %s21
      %s24 = sphi 0, %s22
      %s25 = sphi 0, %s23
      %s37 = sphi 0, %s39
      %s40 = sphi 0, %s37
      %s41 = sphi 0, %s40
      %s57 = sphi 0, %s41
      %s61 = sphi 0, %s61
      %s63 = sphi 0, %s61
      %s64 = sphi 0, %s63
      %s78 = sphi 0, %s64
      %s82 = sphi 0, %s82
      %s84 = sphi 0, %s82
      %s85 = sphi 0, %s84
      %s99 = sphi 0, %s85
      %s107 = sphi 0, %s109
      %s110 = sphi 0, %s107
      %s111 = sphi 0, %s110
      %s127 = sphi 0, %s111
    $region4: #{tpu_custom_call.1} parent=1 // loop_header_branch
      %16 = sbr.rel (%p14) target = $region8
    $region5: #{tpu_custom_call.1} parent=1 // loop_body
      %s18 = ssub.s32 %s13, 1
      %s19 = ssub.s32 %s13, 2
      %s26 = sadd.s32 1, %s21
      %p27 = scmp.ge.s32.totalorder %s26, 1
      %s28 = scalar_select %p27, 0, %s26
      %s29 = sadd.s32 1, %s20
      %s30 = scalar_select %p27, %s29, %s20
      %p31 = scmp.ge.s32.totalorder %s30, 2
      %s32 = scalar_select %p31, 0, %s30
      %s33 = ssub.s32 %s20, %s32
      %s34 = ssub.s32 %s21, %s28
      %s35 = sor.u32 %s33, %s34
      %p36 = scmp.eq.s32.totalorder %s35, 0
      %s38 = sadd.s32 %s37, 1
      %s39 = scalar_select %p36, %s37, %s38
      %p42 = pneg %p36
      %p43 = scmp.eq.s32.totalorder %s13, 1
      %p44 = por %p42, %p43
      %p45 = scmp.ne.s32.totalorder %s37, %s40
      %p46 = scmp.eq.s32.totalorder %s13, 0
      %p47 = por %p45, %p46
      %p48 = scmp.ne.s32.totalorder %s37, %s40
      %p49 = scmp.eq.s32.totalorder %s18, 1
      %p50 = por %p48, %p49
      %p51 = scmp.ne.s32.totalorder %s40, %s41
      %p52 = scmp.eq.s32.totalorder %s18, 0
      %p53 = por %p51, %p52
      %p54 = scmp.ne.s32.totalorder %s40, %s41
      %p55 = scmp.eq.s32.totalorder %s19, 1
      %p56 = por %p54, %p55
      %p58 = scmp.ne.s32.totalorder %s41, %s57
      %p59 = scmp.eq.s32.totalorder %s19, 0
      %p60 = por %p58, %p59
      %s62 = sadd.s32 %s61, 1
      %p65 = scmp.eq.s32.totalorder %s13, 1
      %p66 = scmp.ne.s32.totalorder %s61, %s63
      %p67 = scmp.eq.s32.totalorder %s13, 0
      %p68 = por %p66, %p67
      %p69 = scmp.ne.s32.totalorder %s61, %s63
      %p70 = scmp.eq.s32.totalorder %s18, 1
      %p71 = por %p69, %p70
      %p72 = scmp.ne.s32.totalorder %s63, %s64
      %p73 = scmp.eq.s32.totalorder %s18, 0
      %p74 = por %p72, %p73
      %p75 = scmp.ne.s32.totalorder %s63, %s64
      %p76 = scmp.eq.s32.totalorder %s19, 1
      %p77 = por %p75, %p76
      %p79 = scmp.ne.s32.totalorder %s64, %s78
      %p80 = scmp.eq.s32.totalorder %s19, 0
      %p81 = por %p79, %p80
      %s83 = sadd.s32 %s82, 1
      %p86 = scmp.eq.s32.totalorder %s13, 1
      %p87 = scmp.ne.s32.totalorder %s82, %s84
      %p88 = scmp.eq.s32.totalorder %s13, 0
      %p89 = por %p87, %p88
      %p90 = scmp.ne.s32.totalorder %s82, %s84
      %p91 = scmp.eq.s32.totalorder %s18, 1
      %p92 = por %p90, %p91
      %p93 = scmp.ne.s32.totalorder %s84, %s85
      %p94 = scmp.eq.s32.totalorder %s18, 0
      %p95 = por %p93, %p94
      %p96 = scmp.ne.s32.totalorder %s84, %s85
      %p97 = scmp.eq.s32.totalorder %s19, 1
      %p98 = por %p96, %p97
      %p100 = scmp.ne.s32.totalorder %s85, %s99
      %p101 = scmp.eq.s32.totalorder %s19, 0
      %p102 = por %p100, %p101
      %s103 = ssub.s32 %s20, %s32
      %s104 = ssub.s32 %s21, %s28
      %s105 = sor.u32 %s103, %s104
      %p106 = scmp.eq.s32.totalorder %s105, 0
      %s108 = sadd.s32 %s107, 1
      %s109 = scalar_select %p106, %s107, %s108
      %p112 = pneg %p106
      %p113 = scmp.eq.s32.totalorder %s13, 1
      %p114 = por %p112, %p113
      %p115 = scmp.ne.s32.totalorder %s107, %s110
      %p116 = scmp.eq.s32.totalorder %s13, 0
      %p117 = por %p115, %p116
      %p118 = scmp.ne.s32.totalorder %s107, %s110
      %p119 = scmp.eq.s32.totalorder %s18, 1
      %p120 = por %p118, %p119
      %p121 = scmp.ne.s32.totalorder %s110, %s111
      %p122 = scmp.eq.s32.totalorder %s18, 0
      %p123 = por %p121, %p122
      %p124 = scmp.ne.s32.totalorder %s110, %s111
      %p125 = scmp.eq.s32.totalorder %s19, 1
      %p126 = por %p124, %p125
      %p128 = scmp.ne.s32.totalorder %s111, %s127
      %p129 = scmp.eq.s32.totalorder %s19, 0
      %p130 = por %p128, %p129
      %p131 = scmp.le.s32.totalorder 1, %s13
      %p132 = scmp.lt.s32.totalorder %s13, 3
      %p133 = pnand %p131, %p132
      %p134 = pneg %p133
      // Predicated region
      $region9: #{tpu_custom_call.1} parent=5 // pred_check
        _
      $region10: #{tpu_custom_call.1} parent=5 // pred_check_branch
        %136 = sbr.rel (%p133) target = $region12
      $region11: #{tpu_custom_call.1} parent=5 // pred_region
        %s137 = ssub.s32 %s13, 1
        // Predicated region
        $region13: #{tpu_custom_call.1} parent=11 // pred_check
          %p138 = pneg %p74
        $region14: #{tpu_custom_call.1} parent=11 // pred_check_branch
          %140 = sbr.rel (%p138) target = $region16
        $region15: #{tpu_custom_call.1} parent=11 // pred_region
          %s142 = ssub.s32 4096, 4096
          %143 = vsyncadd [#allocation3], %s142
          %s144 = sshll.u32 [#allocation2], 4
          %s145 = int_to_ptr.vmem [resolvable:$true] %s144
          %150 = dma.hbm_to_vmem [thread:$0]  %s1, 4096, %s145, [#allocation3], 128, 128, 8
        $region16: #{tpu_custom_call.1} parent=11 // pred_fallthru
          _
        // Predicated region
        $region17: #{tpu_custom_call.1} parent=11 // pred_check
          %p151 = pneg %p95
        $region18: #{tpu_custom_call.1} parent=11 // pred_check_branch
          %153 = sbr.rel (%p151) target = $region20
        $region19: #{tpu_custom_call.1} parent=11 // pred_region
          _
        $region20: #{tpu_custom_call.1} parent=11 // pred_fallthru
          _
      $region12: #{tpu_custom_call.1} parent=5 // pred_fallthru
        _
      %p154 = scmp.lt.s32.totalorder %s13, 2
      // Predicated region
      $region21: #{tpu_custom_call.1} parent=5 // pred_check
        %p155 = pneg %p154
      $region22: #{tpu_custom_call.1} parent=5 // pred_check_branch
        %157 = sbr.rel (%p155) target = $region24
      $region23: #{tpu_custom_call.1} parent=5 // pred_region
        // Predicated region
        $region25: #{tpu_custom_call.1} parent=23 // pred_check
          %p158 = pneg %p47
        $region26: #{tpu_custom_call.1} parent=23 // pred_check_branch
          %160 = sbr.rel (%p158) target = $region28
        $region27: #{tpu_custom_call.1} parent=23 // pred_region
          %p161 = scmp.lt.s32.totalorder %s20, 1
          %s162 = scalar_select %p161, %s20, 1
          %p163 = scmp.lt.s32.totalorder %s21, 0
          %s164 = scalar_select %p163, %s21, 0
          %s165 = smul.addr %s164, 3
          %s166 = smul.addr %s162, 3
          %s167 = sadd.s32 %s165, %s166
          %s168 = smul.addr %s167, 4
          %s169 = scalar_lea.vmem %s0, %s168
        $region28: #{tpu_custom_call.1} parent=23 // pred_fallthru
          _
      $region24: #{tpu_custom_call.1} parent=5 // pred_fallthru
        _
      %p170 = scmp.le.s32.totalorder 1, %s13
      %p171 = scmp.lt.s32.totalorder %s13, 3
      %p172 = pnand %p170, %p171
      %p173 = pneg %p172
      // Predicated region
      $region29: #{tpu_custom_call.1} parent=5 // pred_check
        _
      $region30: #{tpu_custom_call.1} parent=5 // pred_check_branch
        %175 = sbr.rel (%p172) target = $region32
      $region31: #{tpu_custom_call.1} parent=5 // pred_region
        %s176 = ssub.s32 %s13, 1
        // Predicated region
        $region33: #{tpu_custom_call.1} parent=31 // pred_check
          %p177 = pneg %p74
        $region34: #{tpu_custom_call.1} parent=31 // pred_check_branch
          %179 = sbr.rel (%p177) target = $region36
        $region35: #{tpu_custom_call.1} parent=31 // pred_region
          %180 = dma.done [#allocation3], 4096
        $region36: #{tpu_custom_call.1} parent=31 // pred_fallthru
          _
        %p181 = scmp.lt.s32.totalorder %s22, 1
        %s182 = scalar_select %p181, %s22, 1
        %p183 = scmp.lt.s32.totalorder %s23, 0
        %s184 = scalar_select %p183, %s23, 0
        %s185 = smul.addr %s184, 3
        %s186 = smul.addr %s182, 3
        %s187 = sadd.s32 %s185, %s186
        %s188 = smul.addr %s187, 4
        %s189 = scalar_lea.vmem %s0, %s188
        %p190 = pneg %p53
        %p191 = pneg %p50
        %p192 = pneg %p74
        %p193 = pneg %p71
        %p194 = pneg %p95
        %p195 = pneg %p92
        %p196 = pneg %p123
        %p197 = pneg %p120
        %s198 = sand.u32 %s110, 1
        %s199 = scalar_lea.sflag [#allocation4], %s198
        %s200 = sand.u32 %s110, 1
        %s201 = smul.addr %s200, 64
        %s202 = scalar_lea.vmem [#allocation5], %s201
        %p203 = scmp.lt.s32.totalorder %s22, 1
        %s204 = scalar_select %p203, %s22, 1
        %p205 = scmp.lt.s32.totalorder %s23, 0
        %s206 = scalar_select %p205, %s23, 0
        %s207 = smul.addr %s206, 3
        %s208 = smul.addr %s204, 3
        %s209 = sadd.s32 %s207, %s208
        %s210 = smul.addr %s209, 4
        %s211 = scalar_lea.vmem %s0, %s210
        %s212 = smul.u32 2, %s23
        %v214 = vld [vmem:[%s2] sm:$0x3]
        %v215 = vld [vmem:[#allocation2] sm:$0xff]
        %v216 = vld [vmem:[#allocation2 + $0x8] sm:$0xff]
        %v217 = vld [vmem:[#allocation2 + $0x10] sm:$0xff]
        %v218 = vld [vmem:[#allocation2 + $0x18] sm:$0xff]
        %v219 = vld [vmem:[#allocation2 + $0x20] sm:$0xff]
        %v220 = vld [vmem:[#allocation2 + $0x28] sm:$0xff]
        %v221 = vld [vmem:[#allocation2 + $0x30] sm:$0xff]
        %v222 = vld [vmem:[#allocation2 + $0x38] sm:$0xff]
        %s223 = scalar_lea.vmem [#allocation2], 64
        %v224 = vld [vmem:[%s223] sm:$0xff]
        %v225 = vld [vmem:[%s223 + $0x8] sm:$0xff]
        %v226 = vld [vmem:[%s223 + $0x10] sm:$0xff]
        %v227 = vld [vmem:[%s223 + $0x18] sm:$0xff]
        %v228 = vld [vmem:[%s223 + $0x20] sm:$0xff]
        %v229 = vld [vmem:[%s223 + $0x28] sm:$0xff]
        %v230 = vld [vmem:[%s223 + $0x30] sm:$0xff]
        %v231 = vld [vmem:[%s223 + $0x38] sm:$0xff]
        %s232 = scalar_lea.vmem [#allocation2], 128
        %v233 = vld [vmem:[%s232] sm:$0xff]
        %v234 = vld [vmem:[%s232 + $0x8] sm:$0xff]
        %v235 = vld [vmem:[%s232 + $0x10] sm:$0xff]
        %v236 = vld [vmem:[%s232 + $0x18] sm:$0xff]
        %v237 = vld [vmem:[%s232 + $0x20] sm:$0xff]
        %v238 = vld [vmem:[%s232 + $0x28] sm:$0xff]
        %v239 = vld [vmem:[%s232 + $0x30] sm:$0xff]
        %v240 = vld [vmem:[%s232 + $0x38] sm:$0xff]
        %s241 = scalar_lea.vmem [#allocation2], 192
        %v242 = vld [vmem:[%s241] sm:$0xff]
        %v243 = vld [vmem:[%s241 + $0x8] sm:$0xff]
        %v244 = vld [vmem:[%s241 + $0x10] sm:$0xff]
        %v245 = vld [vmem:[%s241 + $0x18] sm:$0xff]
        %v246 = vld [vmem:[%s241 + $0x20] sm:$0xff]
        %v247 = vld [vmem:[%s241 + $0x28] sm:$0xff]
        %v248 = vld [vmem:[%s241 + $0x30] sm:$0xff]
        %v249 = vld [vmem:[%s241 + $0x38] sm:$0xff]
        %v250 = vld [vmem:[%s211] sm:$0xf]
        %v251 = vld [vmem:[%s211 + $0x4] sm:$0xf]
        %v252 = vld [vmem:[%s211 + $0x8] sm:$0x1]
        %v256 = vunpack.c.l.b16 %v250
        %v257 = vunpack.c.l.b16 %v251
        %v258 = vunpack.c.l.b16 %v252
        %v259 = vpack.c.b16 %v257, %v256
        %v260 = vpack.c.b16 %v258, %v258
        %vm261 = vsmask.f32 7424
        %v263 = vshrl.u32 %v259, 16
        %v265 = vshll.u32 %v259, 16
        %v267 = vrot.slane %v265, 1
        %v268 = vor.u32 %v263, %v267
        %v270 = vshll.u32 %v260, 16
        %v272 = vrot.slane %v270, 1
        %v273 = vsel %vm261, %v268, %v272
        %v282 = vunpack.c.l.b16 %v224
        %v283 = vunpack.c.h.b16 %v224
        %v284 = vunpack.c.l.b16 %v225
        %v285 = vunpack.c.h.b16 %v225
        %v286 = vunpack.c.l.b16 %v226
        %v287 = vunpack.c.h.b16 %v226
        %v288 = vunpack.c.l.b16 %v227
        %v289 = vunpack.c.h.b16 %v227
        %v290 = vunpack.c.l.b16 %v228
        %v291 = vunpack.c.h.b16 %v228
        %v292 = vunpack.c.l.b16 %v229
        %v293 = vunpack.c.h.b16 %v229
        %v294 = vunpack.c.l.b16 %v230
        %v295 = vunpack.c.h.b16 %v230
        %v296 = vunpack.c.l.b16 %v231
        %v297 = vunpack.c.h.b16 %v231
        %v298 = vpack.c.b16 %v284, %v282
        %v299 = vpack.c.b16 %v285, %v283
        %v300 = vpack.c.b16 %v288, %v286
        %v301 = vpack.c.b16 %v289, %v287
        %v302 = vpack.c.b16 %v292, %v290
        %v303 = vpack.c.b16 %v293, %v291
        %v304 = vpack.c.b16 %v296, %v294
        %v305 = vpack.c.b16 %v297, %v295
        %vm314 = vcmask 523264
        %v316 = vsel %vm314, %v273, 0
        %318 = vmatprep.subr.bf16.mxu0 %v299
        %319 = vmatpush1.bf16.msra.mxu0 %v298
        %320 = vmatprep.subr.bf16.mxu0 %v301
        %321 = vmatpush1.bf16.msra.mxu0 %v300
        %322 = vmatprep.subr.bf16.mxu0 %v303
        %323 = vmatpush1.bf16.msra.mxu0 %v302
        %324 = vmatprep.subr.bf16.mxu0 %v305
        %325 = vmatpush1.bf16.msra.mxu0 %v304
        %326 = vmatprep.subr.bf16.mxu0 0
        %327 = vmatpush1.bf16.msra.mxu0 0
        %328 = vmatprep.subr.bf16.mxu0 0
        %329 = vmatpush1.bf16.msra.mxu0 0
        %330 = vmatprep.subr.bf16.mxu0 0
        %331 = vmatpush1.bf16.msra.mxu0 0
        %332 = vmatprep.subr.bf16.mxu0 0
        %333 = vmatpush1.bf16.msra.mxu0 0
        %334 = vmatprep.subr.bf16.mxu0 0
        %335 = vmatpush1.bf16.msra.mxu0 0
        %336 = vmatprep.subr.bf16.mxu0 0
        %337 = vmatpush1.bf16.msra.mxu0 0
        %338 = vmatprep.subr.bf16.mxu0 0
        %339 = vmatpush1.bf16.msra.mxu0 0
        %340 = vmatprep.subr.bf16.mxu0 0
        %341 = vmatpush1.bf16.msra.mxu0 0
        %342 = vmatprep.subr.bf16.mxu0 0
        %343 = vmatpush1.bf16.msra.mxu0 0
        %344 = vmatprep.subr.bf16.mxu0 0
        %345 = vmatpush1.bf16.msra.mxu0 0
        %346 = vmatprep.subr.bf16.mxu0 0
        %347 = vmatpush1.bf16.msra.mxu0 0
        %348 = vmatprep.subr.bf16.mxu0 0
        %349 = vmatpush1.bf16.msra.mxu0 0
        %350 = vmatprep.mubr.bf16.mxu0 0
        %351 = vmatmul.mubr.bf16.gmra.mrb[0].mxu0 %v316
        %v352 = vpop.f32.mrb[0].mxu0
        %v353 = vadd.f32 0.0, %v352
        %v354 = vpop.f32.mrb[0].mxu0
        %v355 = vadd.f32 0.0, %v354
        %v356 = vpop.f32.mrb[0].mxu0
        %v357 = vadd.f32 0.0, %v356
        %v358 = vpop.f32.mrb[0].mxu0
        %v359 = vadd.f32 0.0, %v358
        %360 = vdwg.mxu0
        %v369 = vunpack.c.l.b16 %v215
        %v370 = vunpack.c.h.b16 %v215
        %v371 = vunpack.c.l.b16 %v216
        %v372 = vunpack.c.h.b16 %v216
        %v373 = vunpack.c.l.b16 %v217
        %v374 = vunpack.c.h.b16 %v217
        %v375 = vunpack.c.l.b16 %v218
        %v376 = vunpack.c.h.b16 %v218
        %v377 = vunpack.c.l.b16 %v219
        %v378 = vunpack.c.h.b16 %v219
        %v379 = vunpack.c.l.b16 %v220
        %v380 = vunpack.c.h.b16 %v220
        %v381 = vunpack.c.l.b16 %v221
        %v382 = vunpack.c.h.b16 %v221
        %v383 = vunpack.c.l.b16 %v222
        %v384 = vunpack.c.h.b16 %v222
        %v385 = vpack.c.b16 %v371, %v369
        %v386 = vpack.c.b16 %v372, %v370
        %v387 = vpack.c.b16 %v375, %v373
        %v388 = vpack.c.b16 %v376, %v374
        %v389 = vpack.c.b16 %v379, %v377
        %v390 = vpack.c.b16 %v380, %v378
        %v391 = vpack.c.b16 %v383, %v381
        %v392 = vpack.c.b16 %v384, %v382
        %v401 = vsel %vm314, %v259, 0
        %403 = vmatprep.subr.bf16.mxu0 %v386
        %404 = vmatpush1.bf16.msra.mxu0 %v385
        %405 = vmatprep.subr.bf16.mxu0 %v388
        %406 = vmatpush1.bf16.msra.mxu0 %v387
        %407 = vmatprep.subr.bf16.mxu0 %v390
        %408 = vmatpush1.bf16.msra.mxu0 %v389
        %409 = vmatprep.subr.bf16.mxu0 %v392
        %410 = vmatpush1.bf16.msra.mxu0 %v391
        %411 = vmatprep.subr.bf16.mxu0 0
        %412 = vmatpush1.bf16.msra.mxu0 0
        %413 = vmatprep.subr.bf16.mxu0 0
        %414 = vmatpush1.bf16.msra.mxu0 0
        %415 = vmatprep.subr.bf16.mxu0 0
        %416 = vmatpush1.bf16.msra.mxu0 0
        %417 = vmatprep.subr.bf16.mxu0 0
        %418 = vmatpush1.bf16.msra.mxu0 0
        %419 = vmatprep.subr.bf16.mxu0 0
        %420 = vmatpush1.bf16.msra.mxu0 0
        %421 = vmatprep.subr.bf16.mxu0 0
        %422 = vmatpush1.bf16.msra.mxu0 0
        %423 = vmatprep.subr.bf16.mxu0 0
        %424 = vmatpush1.bf16.msra.mxu0 0
        %425 = vmatprep.subr.bf16.mxu0 0
        %426 = vmatpush1.bf16.msra.mxu0 0
        %427 = vmatprep.subr.bf16.mxu0 0
        %428 = vmatpush1.bf16.msra.mxu0 0
        %429 = vmatprep.subr.bf16.mxu0 0
        %430 = vmatpush1.bf16.msra.mxu0 0
        %431 = vmatprep.subr.bf16.mxu0 0
        %432 = vmatpush1.bf16.msra.mxu0 0
        %433 = vmatprep.subr.bf16.mxu0 0
        %434 = vmatpush1.bf16.msra.mxu0 0
        %435 = vmatprep.mubr.bf16.mxu0 0
        %436 = vmatmul.mubr.bf16.gmra.mrb[0].mxu0 %v401
        %v437 = vpop.f32.mrb[0].mxu0
        %v438 = vadd.f32 %v353, %v437
        %v439 = vpop.f32.mrb[0].mxu0
        %v440 = vadd.f32 %v355, %v439
        %v441 = vpop.f32.mrb[0].mxu0
        %v442 = vadd.f32 %v357, %v441
        %v443 = vpop.f32.mrb[0].mxu0
        %v444 = vadd.f32 %v359, %v443
        %445 = vdwg.mxu0
        %v447 = vlaneseq
        %v448 = vshrl.u32 %v447, 7
        %v449 = vsub.s32 0, %v448
        %v450 = vrot.slane %v214, %v449
        %v451 = vlaneseq
        %v452 = vshrl.u32 %v451, 7
        %v453 = vsub.s32 1, %v452
        %v454 = vrot.slane %v214, %v453
        %v457 = vadd.f32 %v438, %v450
        %v458 = vadd.f32 %v440, %v454
        %v459 = vadd.f32 %v442, %v450
        %v460 = vadd.f32 %v444, %v454
        %v461 = vmax.f32 %v457, 0.0
        %v462 = vmax.f32 %v458, 0.0
        %v463 = vmax.f32 %v459, 0.0
        %v464 = vmax.f32 %v460, 0.0
        %465 = vst [vmem:[%s202] sm:$0xff] %v461
        %466 = vst [vmem:[%s202 + $0x8] sm:$0xff] %v462
        %467 = vst [vmem:[%s202 + $0x10] sm:$0xff] %v463
        %468 = vst [vmem:[%s202 + $0x18] sm:$0xff] %v464
        %v469 = vld [vmem:[%s211] sm:$0xf]
        %v470 = vld [vmem:[%s211 + $0x4] sm:$0xf]
        %v471 = vld [vmem:[%s211 + $0x8] sm:$0x1]
        %v472 = vld [vmem:[%s211] sm:$0xe]
        %v476 = vunpack.c.l.b16 %v472
        %v477 = vunpack.c.l.b16 %v470
        %v478 = vunpack.c.l.b16 %v471
        %v479 = vpack.c.b16 %v477, %v476
        %v480 = vpack.c.b16 %v478, %v478
        %vm481 = vcmask 1046528
        %v482 = vrot.slane %v479, 1
        %v483 = vrot.slane %v480, 1
        %v484 = vsel %vm481, %v482, %v483
        %v493 = vunpack.c.l.b16 %v242
        %v494 = vunpack.c.h.b16 %v242
        %v495 = vunpack.c.l.b16 %v243
        %v496 = vunpack.c.h.b16 %v243
        %v497 = vunpack.c.l.b16 %v244
        %v498 = vunpack.c.h.b16 %v244
        %v499 = vunpack.c.l.b16 %v245
        %v500 = vunpack.c.h.b16 %v245
        %v501 = vunpack.c.l.b16 %v246
        %v502 = vunpack.c.h.b16 %v246
        %v503 = vunpack.c.l.b16 %v247
        %v504 = vunpack.c.h.b16 %v247
        %v505 = vunpack.c.l.b16 %v248
        %v506 = vunpack.c.h.b16 %v248
        %v507 = vunpack.c.l.b16 %v249
        %v508 = vunpack.c.h.b16 %v249
        %v509 = vpack.c.b16 %v495, %v493
        %v510 = vpack.c.b16 %v496, %v494
        %v511 = vpack.c.b16 %v499, %v497
        %v512 = vpack.c.b16 %v500, %v498
        %v513 = vpack.c.b16 %v503, %v501
        %v514 = vpack.c.b16 %v504, %v502
        %v515 = vpack.c.b16 %v507, %v505
        %v516 = vpack.c.b16 %v508, %v506
        %v526 = vsel %vm314, %v484, 0
        %528 = vmatprep.subr.bf16.mxu0 %v510
        %529 = vmatpush1.bf16.msra.mxu0 %v509
        %530 = vmatprep.subr.bf16.mxu0 %v512
        %531 = vmatpush1.bf16.msra.mxu0 %v511
        %532 = vmatprep.subr.bf16.mxu0 %v514
        %533 = vmatpush1.bf16.msra.mxu0 %v513
        %534 = vmatprep.subr.bf16.mxu0 %v516
        %535 = vmatpush1.bf16.msra.mxu0 %v515
        %536 = vmatprep.subr.bf16.mxu0 0
        %537 = vmatpush1.bf16.msra.mxu0 0
        %538 = vmatprep.subr.bf16.mxu0 0
        %539 = vmatpush1.bf16.msra.mxu0 0
        %540 = vmatprep.subr.bf16.mxu0 0
        %541 = vmatpush1.bf16.msra.mxu0 0
        %542 = vmatprep.subr.bf16.mxu0 0
        %543 = vmatpush1.bf16.msra.mxu0 0
        %544 = vmatprep.subr.bf16.mxu0 0
        %545 = vmatpush1.bf16.msra.mxu0 0
        %546 = vmatprep.subr.bf16.mxu0 0
        %547 = vmatpush1.bf16.msra.mxu0 0
        %548 = vmatprep.subr.bf16.mxu0 0
        %549 = vmatpush1.bf16.msra.mxu0 0
        %550 = vmatprep.subr.bf16.mxu0 0
        %551 = vmatpush1.bf16.msra.mxu0 0
        %552 = vmatprep.subr.bf16.mxu0 0
        %553 = vmatpush1.bf16.msra.mxu0 0
        %554 = vmatprep.subr.bf16.mxu0 0
        %555 = vmatpush1.bf16.msra.mxu0 0
        %556 = vmatprep.subr.bf16.mxu0 0
        %557 = vmatpush1.bf16.msra.mxu0 0
        %558 = vmatprep.subr.bf16.mxu0 0
        %559 = vmatpush1.bf16.msra.mxu0 0
        %560 = vmatprep.mubr.bf16.mxu0 0
        %561 = vmatmul.mubr.bf16.gmra.mrb[0].mxu0 %v526
        %v562 = vpop.f32.mrb[0].mxu0
        %v563 = vadd.f32 0.0, %v562
        %v564 = vpop.f32.mrb[0].mxu0
        %v565 = vadd.f32 0.0, %v564
        %v566 = vpop.f32.mrb[0].mxu0
        %v567 = vadd.f32 0.0, %v566
        %v568 = vpop.f32.mrb[0].mxu0
        %v569 = vadd.f32 0.0, %v568
        %570 = vdwg.mxu0
        %v572 = vunpack.c.l.b16 %v469
        %v573 = vpack.c.b16 %v477, %v572
        %v575 = vshrl.u32 %v573, 16
        %v577 = vshll.u32 %v573, 16
        %v579 = vrot.slane %v577, 1
        %v580 = vor.u32 %v575, %v579
        %v582 = vshll.u32 %v480, 16
        %v584 = vrot.slane %v582, 1
        %v585 = vsel %vm261, %v580, %v584
        %v594 = vunpack.c.l.b16 %v233
        %v595 = vunpack.c.h.b16 %v233
        %v596 = vunpack.c.l.b16 %v234
        %v597 = vunpack.c.h.b16 %v234
        %v598 = vunpack.c.l.b16 %v235
        %v599 = vunpack.c.h.b16 %v235
        %v600 = vunpack.c.l.b16 %v236
        %v601 = vunpack.c.h.b16 %v236
        %v602 = vunpack.c.l.b16 %v237
        %v603 = vunpack.c.h.b16 %v237
        %v604 = vunpack.c.l.b16 %v238
        %v605 = vunpack.c.h.b16 %v238
        %v606 = vunpack.c.l.b16 %v239
        %v607 = vunpack.c.h.b16 %v239
        %v608 = vunpack.c.l.b16 %v240
        %v609 = vunpack.c.h.b16 %v240
        %v610 = vpack.c.b16 %v596, %v594
        %v611 = vpack.c.b16 %v597, %v595
        %v612 = vpack.c.b16 %v600, %v598
        %v613 = vpack.c.b16 %v601, %v599
        %v614 = vpack.c.b16 %v604, %v602
        %v615 = vpack.c.b16 %v605, %v603
        %v616 = vpack.c.b16 %v608, %v606
        %v617 = vpack.c.b16 %v609, %v607
        %v627 = vsel %vm314, %v585, 0
        %629 = vmatprep.subr.bf16.mxu0 %v611
        %630 = vmatpush1.bf16.msra.mxu0 %v610
        %631 = vmatprep.subr.bf16.mxu0 %v613
        %632 = vmatpush1.bf16.msra.mxu0 %v612
        %633 = vmatprep.subr.bf16.mxu0 %v615
        %634 = vmatpush1.bf16.msra.mxu0 %v614
        %635 = vmatprep.subr.bf16.mxu0 %v617
        %636 = vmatpush1.bf16.msra.mxu0 %v616
        %637 = vmatprep.subr.bf16.mxu0 0
        %638 = vmatpush1.bf16.msra.mxu0 0
        %639 = vmatprep.subr.bf16.mxu0 0
        %640 = vmatpush1.bf16.msra.mxu0 0
        %641 = vmatprep.subr.bf16.mxu0 0
        %642 = vmatpush1.bf16.msra.mxu0 0
        %643 = vmatprep.subr.bf16.mxu0 0
        %644 = vmatpush1.bf16.msra.mxu0 0
        %645 = vmatprep.subr.bf16.mxu0 0
        %646 = vmatpush1.bf16.msra.mxu0 0
        %647 = vmatprep.subr.bf16.mxu0 0
        %648 = vmatpush1.bf16.msra.mxu0 0
        %649 = vmatprep.subr.bf16.mxu0 0
        %650 = vmatpush1.bf16.msra.mxu0 0
        %651 = vmatprep.subr.bf16.mxu0 0
        %652 = vmatpush1.bf16.msra.mxu0 0
        %653 = vmatprep.subr.bf16.mxu0 0
        %654 = vmatpush1.bf16.msra.mxu0 0
        %655 = vmatprep.subr.bf16.mxu0 0
        %656 = vmatpush1.bf16.msra.mxu0 0
        %657 = vmatprep.subr.bf16.mxu0 0
        %658 = vmatpush1.bf16.msra.mxu0 0
        %659 = vmatprep.subr.bf16.mxu0 0
        %660 = vmatpush1.bf16.msra.mxu0 0
        %661 = vmatprep.mubr.bf16.mxu0 0
        %662 = vmatmul.mubr.bf16.gmra.mrb[0].mxu0 %v627
        %v663 = vpop.f32.mrb[0].mxu0
        %v664 = vadd.f32 %v563, %v663
        %v665 = vpop.f32.mrb[0].mxu0
        %v666 = vadd.f32 %v565, %v665
        %v667 = vpop.f32.mrb[0].mxu0
        %v668 = vadd.f32 %v567, %v667
        %v669 = vpop.f32.mrb[0].mxu0
        %v670 = vadd.f32 %v569, %v669
        %671 = vdwg.mxu0
        %v672 = vadd.f32 %v664, %v450
        %v673 = vadd.f32 %v666, %v454
        %v674 = vadd.f32 %v668, %v450
        %v675 = vadd.f32 %v670, %v454
        %v676 = vmax.f32 %v672, 0.0
        %v677 = vmax.f32 %v673, 0.0
        %v678 = vmax.f32 %v674, 0.0
        %v679 = vmax.f32 %v675, 0.0
        %s680 = scalar_lea.vmem %s202, 32 [#allocation5]
        %681 = vst [vmem:[%s680] sm:$0xff] %v676
        %682 = vst [vmem:[%s680 + $0x8] sm:$0xff] %v677
        %683 = vst [vmem:[%s680 + $0x10] sm:$0xff] %v678
        %684 = vst [vmem:[%s680 + $0x18] sm:$0xff] %v679
        %s685 = sand.u32 %s110, 1
        %s686 = scalar_lea.sflag [#allocation4], %s685
        %s687 = sand.u32 %s110, 1
        %s688 = smul.addr %s687, 64
        %s689 = scalar_lea.vmem [#allocation5], %s688
        // Predicated region
        $region37: #{tpu_custom_call.1} parent=31 // pred_check
          %p690 = pneg %p120
        $region38: #{tpu_custom_call.1} parent=31 // pred_check_branch
          %692 = sbr.rel (%p690) target = $region40
        $region39: #{tpu_custom_call.1} parent=31 // pred_region
          %s693 = smul.u32 2, %s23
          %s695 = ssub.s32 1024, 1024
          %696 = vsyncadd %s686, %s695
          %s697 = smul.addr %s693, 2
          %s698 = smul.addr %s22, 8
          %s699 = sadd.s32 %s697, %s698
          %s700 = smul.addr %s699, 128
          %s701 = scalar_lea.hbm %s3, %s700
          %s702 = sshll.u32 %s689, 4
          %s703 = int_to_ptr.vmem [resolvable:$true] %s702
          %708 = dma.vmem_to_hbm [thread:$0]  %s703, 1024, %s701, %s686, 256, 256, 16
        $region40: #{tpu_custom_call.1} parent=31 // pred_fallthru
          _
      $region32: #{tpu_custom_call.1} parent=5 // pred_fallthru
        _
      %p709 = scmp.le.s32.totalorder 2, %s13
      // Predicated region
      $region41: #{tpu_custom_call.1} parent=5 // pred_check
        %p710 = pneg %p709
      $region42: #{tpu_custom_call.1} parent=5 // pred_check_branch
        %712 = sbr.rel (%p710) target = $region44
      $region43: #{tpu_custom_call.1} parent=5 // pred_region
        %s713 = ssub.s32 %s13, 2
        // Predicated region
        $region45: #{tpu_custom_call.1} parent=43 // pred_check
          %p714 = pneg %p126
        $region46: #{tpu_custom_call.1} parent=43 // pred_check_branch
          %716 = sbr.rel (%p714) target = $region48
        $region47: #{tpu_custom_call.1} parent=43 // pred_region
          %s717 = sand.u32 %s111, 1
          %s718 = scalar_lea.sflag [#allocation4], %s717
          %s719 = sand.u32 %s111, 1
          %s720 = smul.addr %s719, 64
          %s721 = scalar_lea.vmem [#allocation5], %s720
          %722 = dma.done %s718, 1024
        $region48: #{tpu_custom_call.1} parent=43 // pred_fallthru
          _
      $region44: #{tpu_custom_call.1} parent=5 // pred_fallthru
        _
    $region6: #{tpu_custom_call.1} parent=1 // loop_footer
      %s17 = sadd.s32 1, %s13
    $region7: #{tpu_custom_call.1} parent=1 // loop_footer_branch
      %12 = sbr.rel target = $region3
    $region8: #{tpu_custom_call.1} parent=1 // loop_exit
      _
    %723 = vsyncpa [#allocation3], 1
    %s724 = scalar_lea.sflag [#allocation3], 1
    %725 = vsyncpa %s724, 1
    %726 = vsyncpa [#allocation4], 1
    %s727 = scalar_lea.sflag [#allocation4], 1
    %728 = vsyncpa %s727, 1

// kernel: tpu_custom_call.1
$region0: #{tpu_custom_call.1}
  #allocation0 [shape = 'u32[]', space=smem, size = 0x4, offset = 0x4, fixed_abs, tag = 'smem constant byte address 0x4 - core index']
  #allocation1 [shape = 'u32[144,128]{1,0:T(1,128)}', space=vmem, size = 0x12000, scoped, tag = 'internal scratch']
  %s0 = inlined_call_operand.vmem [shape: bf16[2,1,18,64], index: 0, kind: input, shape index: {}]
  %s1 = inlined_call_operand.hbm [shape: bf16[2,2,64,256], index: 1, kind: input, shape index: {}]
  %s2 = inlined_call_operand.vmem [shape: f32[1,256], index: 2, kind: input, shape index: {}]
  %s3 = inlined_call_operand.hbm [shape: f32[2,2,16,256], index: 3, kind: output, shape index: {}]
  %s4 = sld [smem:[#allocation0]]
  $region49: #{tpu_custom_call.1} parent=0
    _
  %s6 = ssub.s32 1, %s4
  %s7 = scalar_select 0, %s6, %s4
  $region1: #{tpu_custom_call.1} parent=0
    #allocation2 [shape = 'u8[131072]{0}', space=vmem, size = 0x20000, scoped, tag = 'input window, operand 1, single buffered']
    #allocation3 [shape = 's32[2]{0}', space=sflag, size = 0x8, scoped, tag = 'scoped memory for tpu_custom_call.1']
    #allocation4 [shape = 's32[2]{0}', space=sflag, size = 0x8, scoped, tag = 'scoped memory for tpu_custom_call.1']
    #allocation5 [shape = 'u8[65536]{0}', space=vmem, size = 0x10000, scoped, tag = 'output window, operand 0']
    %8 = vsyncpa [#allocation3], 0
    %9 = vsyncpa [#allocation4], 0
    %s10 = scalar_lea.sflag [#allocation4], 1
    %11 = vsyncpa %s10, 0
    loop: start=0, step=1, limit=4
    $region2: #{tpu_custom_call.1} parent=1 // loop_pre_header
      _
    $region3: #{tpu_custom_call.1} parent=1 // loop_header
      %s13 = sphi 0, %s17
      %p14 = scmp.ge.s32.totalorder %s13, 4
      %s20 = sphi 0, %s32
      %s21 = sphi 0, %s28
      %s22 = sphi 0, %s20
      %s23 = sphi 0, %s21
      %s24 = sphi 0, %s22
      %s25 = sphi 0, %s23
      %s37 = sphi 0, %s39
      %s40 = sphi 0, %s37
      %s41 = sphi 0, %s40
      %s57 = sphi 0, %s41
      %s61 = sphi 0, %s61
      %s63 = sphi 0, %s61
      %s64 = sphi 0, %s63
      %s78 = sphi 0, %s64
      %s82 = sphi 0, %s82
      %s84 = sphi 0, %s82
      %s85 = sphi 0, %s84
      %s99 = sphi 0, %s85
      %s107 = sphi 0, %s109
      %s110 = sphi 0, %s107
      %s111 = sphi 0, %s110
      %s127 = sphi 0, %s111
    $region4: #{tpu_custom_call.1} parent=1 // loop_header_branch
      %16 = sbr.rel (%p14) target = $region8
    $region5: #{tpu_custom_call.1} parent=1 // loop_body
      %s18 = ssub.s32 %s13, 1
      %s19 = ssub.s32 %s13, 2
      %s26 = sadd.s32 1, %s21
      %p27 = scmp.ge.s32.totalorder %s26, 1
      %s28 = scalar_select %p27, 0, %s26
      %s29 = sadd.s32 1, %s20
      %s30 = scalar_select %p27, %s29, %s20
      %p31 = scmp.ge.s32.totalorder %s30, 2
      %s32 = scalar_select %p31, 0, %s30
      %s33 = ssub.s32 %s20, %s32
      %s34 = ssub.s32 %s21, %s28
      %s35 = sor.u32 %s33, %s34
      %p36 = scmp.eq.s32.totalorder %s35, 0
      %s38 = sadd.s32 %s37, 1
      %s39 = scalar_select %p36, %s37, %s38
      %p42 = pneg %p36
      %p43 = scmp.eq.s32.totalorder %s13, 1
      %p44 = por %p42, %p43
      %p45 = scmp.ne.s32.totalorder %s37, %s40
      %p46 = scmp.eq.s32.totalorder %s13, 0
      %p47 = por %p45, %p46
      %p48 = scmp.ne.s32.totalorder %s37, %s40
      %p49 = scmp.eq.s32.totalorder %s18, 1
      %p50 = por %p48, %p49
      %p51 = scmp.ne.s32.totalorder %s40, %s41
      %p52 = scmp.eq.s32.totalorder %s18, 0
      %p53 = por %p51, %p52
      %p54 = scmp.ne.s32.totalorder %s40, %s41
      %p55 = scmp.eq.s32.totalorder %s19, 1
      %p56 = por %p54, %p55
      %p58 = scmp.ne.s32.totalorder %s41, %s57
      %p59 = scmp.eq.s32.totalorder %s19, 0
      %p60 = por %p58, %p59
      %s62 = sadd.s32 %s61, 1
      %p65 = scmp.eq.s32.totalorder %s13, 1
      %p66 = scmp.ne.s32.totalorder %s61, %s63
      %p67 = scmp.eq.s32.totalorder %s13, 0
      %p68 = por %p66, %p67
      %p69 = scmp.ne.s32.totalorder %s61, %s63
      %p70 = scmp.eq.s32.totalorder %s18, 1
      %p71 = por %p69, %p70
      %p72 = scmp.ne.s32.totalorder %s63, %s64
      %p73 = scmp.eq.s32.totalorder %s18, 0
      %p74 = por %p72, %p73
      %p75 = scmp.ne.s32.totalorder %s63, %s64
      %p76 = scmp.eq.s32.totalorder %s19, 1
      %p77 = por %p75, %p76
      %p79 = scmp.ne.s32.totalorder %s64, %s78
      %p80 = scmp.eq.s32.totalorder %s19, 0
      %p81 = por %p79, %p80
      %s83 = sadd.s32 %s82, 1
      %p86 = scmp.eq.s32.totalorder %s13, 1
      %p87 = scmp.ne.s32.totalorder %s82, %s84
      %p88 = scmp.eq.s32.totalorder %s13, 0
      %p89 = por %p87, %p88
      %p90 = scmp.ne.s32.totalorder %s82, %s84
      %p91 = scmp.eq.s32.totalorder %s18, 1
      %p92 = por %p90, %p91
      %p93 = scmp.ne.s32.totalorder %s84, %s85
      %p94 = scmp.eq.s32.totalorder %s18, 0
      %p95 = por %p93, %p94
      %p96 = scmp.ne.s32.totalorder %s84, %s85
      %p97 = scmp.eq.s32.totalorder %s19, 1
      %p98 = por %p96, %p97
      %p100 = scmp.ne.s32.totalorder %s85, %s99
      %p101 = scmp.eq.s32.totalorder %s19, 0
      %p102 = por %p100, %p101
      %s103 = ssub.s32 %s20, %s32
      %s104 = ssub.s32 %s21, %s28
      %s105 = sor.u32 %s103, %s104
      %p106 = scmp.eq.s32.totalorder %s105, 0
      %s108 = sadd.s32 %s107, 1
      %s109 = scalar_select %p106, %s107, %s108
      %p112 = pneg %p106
      %p113 = scmp.eq.s32.totalorder %s13, 1
      %p114 = por %p112, %p113
      %p115 = scmp.ne.s32.totalorder %s107, %s110
      %p116 = scmp.eq.s32.totalorder %s13, 0
      %p117 = por %p115, %p116
      %p118 = scmp.ne.s32.totalorder %s107, %s110
      %p119 = scmp.eq.s32.totalorder %s18, 1
      %p120 = por %p118, %p119
      %p121 = scmp.ne.s32.totalorder %s110, %s111
      %p122 = scmp.eq.s32.totalorder %s18, 0
      %p123 = por %p121, %p122
      %p124 = scmp.ne.s32.totalorder %s110, %s111
      %p125 = scmp.eq.s32.totalorder %s19, 1
      %p126 = por %p124, %p125
      %p128 = scmp.ne.s32.totalorder %s111, %s127
      %p129 = scmp.eq.s32.totalorder %s19, 0
      %p130 = por %p128, %p129
      %p131 = scmp.le.s32.totalorder 1, %s13
      %p132 = scmp.lt.s32.totalorder %s13, 3
      %p133 = pnand %p131, %p132
      %p134 = pneg %p133
      // Predicated region
      $region9: #{tpu_custom_call.1} parent=5 // pred_check
        _
      $region10: #{tpu_custom_call.1} parent=5 // pred_check_branch
        %136 = sbr.rel (%p133) target = $region12
      $region11: #{tpu_custom_call.1} parent=5 // pred_region
        %s137 = ssub.s32 %s13, 1
        // Predicated region
        $region13: #{tpu_custom_call.1} parent=11 // pred_check
          %p138 = pneg %p74
        $region14: #{tpu_custom_call.1} parent=11 // pred_check_branch
          %140 = sbr.rel (%p138) target = $region16
        $region15: #{tpu_custom_call.1} parent=11 // pred_region
          %s142 = ssub.s32 4096, 4096
          %143 = vsyncadd [#allocation3], %s142
          %s144 = sshll.u32 [#allocation2], 4
          %s145 = int_to_ptr.vmem [resolvable:$true] %s144
          %150 = dma.hbm_to_vmem [thread:$0]  %s1, 4096, %s145, [#allocation3], 128, 128, 8
        $region16: #{tpu_custom_call.1} parent=11 // pred_fallthru
          _
        // Predicated region
        $region17: #{tpu_custom_call.1} parent=11 // pred_check
          %p151 = pneg %p95
        $region18: #{tpu_custom_call.1} parent=11 // pred_check_branch
          %153 = sbr.rel (%p151) target = $region20
        $region19: #{tpu_custom_call.1} parent=11 // pred_region
          _
        $region20: #{tpu_custom_call.1} parent=11 // pred_fallthru
          _
      $region12: #{tpu_custom_call.1} parent=5 // pred_fallthru
        _
      %p154 = scmp.lt.s32.totalorder %s13, 2
      // Predicated region
      $region21: #{tpu_custom_call.1} parent=5 // pred_check
        %p155 = pneg %p154
      $region22: #{tpu_custom_call.1} parent=5 // pred_check_branch
        %157 = sbr.rel (%p155) target = $region24
      $region23: #{tpu_custom_call.1} parent=5 // pred_region
        // Predicated region
        $region25: #{tpu_custom_call.1} parent=23 // pred_check
          %p158 = pneg %p47
        $region26: #{tpu_custom_call.1} parent=23 // pred_check_branch
          %160 = sbr.rel (%p158) target = $region28
        $region27: #{tpu_custom_call.1} parent=23 // pred_region
          %p161 = scmp.lt.s32.totalorder %s20, 1
          %s162 = scalar_select %p161, %s20, 1
          %p163 = scmp.lt.s32.totalorder %s21, 0
          %s164 = scalar_select %p163, %s21, 0
          %s165 = smul.addr %s164, 3
          %s166 = smul.addr %s162, 3
          %s167 = sadd.s32 %s165, %s166
          %s168 = smul.addr %s167, 4
          %s169 = scalar_lea.vmem %s0, %s168
        $region28: #{tpu_custom_call.1} parent=23 // pred_fallthru
          _
      $region24: #{tpu_custom_call.1} parent=5 // pred_fallthru
        _
      %p170 = scmp.le.s32.totalorder 1, %s13
      %p171 = scmp.lt.s32.totalorder %s13, 3
      %p172 = pnand %p170, %p171
      %p173 = pneg %p172
      // Predicated region
      $region29: #{tpu_custom_call.1} parent=5 // pred_check
        _
      $region30: #{tpu_custom_call.1} parent=5 // pred_check_branch
        %175 = sbr.rel (%p172) target = $region32
      $region31: #{tpu_custom_call.1} parent=5 // pred_region
        %s176 = ssub.s32 %s13, 1
        // Predicated region
        $region33: #{tpu_custom_call.1} parent=31 // pred_check
          %p177 = pneg %p74
        $region34: #{tpu_custom_call.1} parent=31 // pred_check_branch
          %179 = sbr.rel (%p177) target = $region36
        $region35: #{tpu_custom_call.1} parent=31 // pred_region
          %180 = dma.done [#allocation3], 4096
        $region36: #{tpu_custom_call.1} parent=31 // pred_fallthru
          _
        %p181 = scmp.lt.s32.totalorder %s22, 1
        %s182 = scalar_select %p181, %s22, 1
        %p183 = scmp.lt.s32.totalorder %s23, 0
        %s184 = scalar_select %p183, %s23, 0
        %s185 = smul.addr %s184, 3
        %s186 = smul.addr %s182, 3
        %s187 = sadd.s32 %s185, %s186
        %s188 = smul.addr %s187, 4
        %s189 = scalar_lea.vmem %s0, %s188
        %p190 = pneg %p53
        %p191 = pneg %p50
        %p192 = pneg %p74
        %p193 = pneg %p71
        %p194 = pneg %p95
        %p195 = pneg %p92
        %p196 = pneg %p123
        %p197 = pneg %p120
        %s198 = sand.u32 %s110, 1
        %s199 = scalar_lea.sflag [#allocation4], %s198
        %s200 = sand.u32 %s110, 1
        %s201 = smul.addr %s200, 64
        %s202 = scalar_lea.vmem [#allocation5], %s201
        %p203 = scmp.lt.s32.totalorder %s22, 1
        %s204 = scalar_select %p203, %s22, 1
        %p205 = scmp.lt.s32.totalorder %s23, 0
        %s206 = scalar_select %p205, %s23, 0
        %s207 = smul.addr %s206, 3
        %s208 = smul.addr %s204, 3
        %s209 = sadd.s32 %s207, %s208
        %s210 = smul.addr %s209, 4
        %s211 = scalar_lea.vmem %s0, %s210
        %s212 = smul.u32 2, %s23
        %v214 = vld [vmem:[%s2] sm:$0x3]
        %v215 = vld [vmem:[#allocation2] sm:$0xff]
        %v216 = vld [vmem:[#allocation2 + $0x8] sm:$0xff]
        %v217 = vld [vmem:[#allocation2 + $0x10] sm:$0xff]
        %v218 = vld [vmem:[#allocation2 + $0x18] sm:$0xff]
        %v219 = vld [vmem:[#allocation2 + $0x20] sm:$0xff]
        %v220 = vld [vmem:[#allocation2 + $0x28] sm:$0xff]
        %v221 = vld [vmem:[#allocation2 + $0x30] sm:$0xff]
        %v222 = vld [vmem:[#allocation2 + $0x38] sm:$0xff]
        %s223 = scalar_lea.vmem [#allocation2], 64
        %v224 = vld [vmem:[%s223] sm:$0xff]
        %v225 = vld [vmem:[%s223 + $0x8] sm:$0xff]
        %v226 = vld [vmem:[%s223 + $0x10] sm:$0xff]
        %v227 = vld [vmem:[%s223 + $0x18] sm:$0xff]
        %v228 = vld [vmem:[%s223 + $0x20] sm:$0xff]
        %v229 = vld [vmem:[%s223 + $0x28] sm:$0xff]
        %v230 = vld [vmem:[%s223 + $0x30] sm:$0xff]
        %v231 = vld [vmem:[%s223 + $0x38] sm:$0xff]
        %s232 = scalar_lea.vmem [#allocation2], 128
        %v233 = vld [vmem:[%s232] sm:$0xff]
        %v234 = vld [vmem:[%s232 + $0x8] sm:$0xff]
        %v235 = vld [vmem:[%s232 + $0x10] sm:$0xff]
        %v236 = vld [vmem:[%s232 + $0x18] sm:$0xff]
        %v237 = vld [vmem:[%s232 + $0x20] sm:$0xff]
        %v238 = vld [vmem:[%s232 + $0x28] sm:$0xff]
        %v239 = vld [vmem:[%s232 + $0x30] sm:$0xff]
        %v240 = vld [vmem:[%s232 + $0x38] sm:$0xff]
        %s241 = scalar_lea.vmem [#allocation2], 192
        %v242 = vld [vmem:[%s241] sm:$0xff]
        %v243 = vld [vmem:[%s241 + $0x8] sm:$0xff]
        %v244 = vld [vmem:[%s241 + $0x10] sm:$0xff]
        %v245 = vld [vmem:[%s241 + $0x18] sm:$0xff]
        %v246 = vld [vmem:[%s241 + $0x20] sm:$0xff]
        %v247 = vld [vmem:[%s241 + $0x28] sm:$0xff]
        %v248 = vld [vmem:[%s241 + $0x30] sm:$0xff]
        %v249 = vld [vmem:[%s241 + $0x38] sm:$0xff]
        %v250 = vld [vmem:[%s211] sm:$0xf]
        %v251 = vld [vmem:[%s211 + $0x4] sm:$0xf]
        %v252 = vld [vmem:[%s211 + $0x8] sm:$0x1]
        %v256 = vunpack.c.l.b16 %v250
        %v257 = vunpack.c.l.b16 %v251
        %v258 = vunpack.c.l.b16 %v252
        %v259 = vpack.c.b16 %v257, %v256
        %v260 = vpack.c.b16 %v258, %v258
        %vm261 = vsmask.f32 7424
        %v263 = vshrl.u32 %v259, 16
        %v265 = vshll.u32 %v259, 16
        %v267 = vrot.slane %v265, 1
        %v268 = vor.u32 %v263, %v267
        %v270 = vshll.u32 %v260, 16
        %v272 = vrot.slane %v270, 1
        %v273 = vsel %vm261, %v268, %v272
        %v282 = vunpack.c.l.b16 %v224
        %v283 = vunpack.c.h.b16 %v224
        %v284 = vunpack.c.l.b16 %v225
        %v285 = vunpack.c.h.b16 %v225
        %v286 = vunpack.c.l.b16 %v226
        %v287 = vunpack.c.h.b16 %v226
        %v288 = vunpack.c.l.b16 %v227
        %v289 = vunpack.c.h.b16 %v227
        %v290 = vunpack.c.l.b16 %v228
        %v291 = vunpack.c.h.b16 %v228
        %v292 = vunpack.c.l.b16 %v229
        %v293 = vunpack.c.h.b16 %v229
        %v294 = vunpack.c.l.b16 %v230
        %v295 = vunpack.c.h.b16 %v230
        %v296 = vunpack.c.l.b16 %v231
        %v297 = vunpack.c.h.b16 %v231
        %v298 = vpack.c.b16 %v284, %v282
        %v299 = vpack.c.b16 %v285, %v283
        %v300 = vpack.c.b16 %v288, %v286
        %v301 = vpack.c.b16 %v289, %v287
        %v302 = vpack.c.b16 %v292, %v290
        %v303 = vpack.c.b16 %v293, %v291
        %v304 = vpack.c.b16 %v296, %v294
        %v305 = vpack.c.b16 %v297, %v295
        %vm314 = vcmask 523264
        %v316 = vsel %vm314, %v273, 0
        %318 = vmatprep.subr.bf16.mxu0 %v299
        %319 = vmatpush1.bf16.msra.mxu0 %v298
        %320 = vmatprep.subr.bf16.mxu0 %v301
        %321 = vmatpush1.bf16.msra.mxu0 %v300
        %322 = vmatprep.subr.bf16.mxu0 %v303
        %323 = vmatpush1.bf16.msra.mxu0 %v302
        %324 = vmatprep.subr.bf16.mxu0 %v305
        %325 = vmatpush1.bf16.msra.mxu0 %v304
        %326 = vmatprep.subr.bf16.mxu0 0
        %327 = vmatpush1.bf16.msra.mxu0 0
        %328 = vmatprep.subr.bf16.mxu0 0
        %329 = vmatpush1.bf16.msra.mxu0 0
        %330 = vmatprep.subr.bf16.mxu0 0
        %331 = vmatpush1.bf16.msra.mxu0 0
        %332 = vmatprep.subr.bf16.mxu0 0
        %333 = vmatpush1.bf16.msra.mxu0 0
        %334 = vmatprep.subr.bf16.mxu0 0
        %335 = vmatpush1.bf16.msra.mxu0 0
        %336 = vmatprep.subr.bf16.mxu0 0
        %337 = vmatpush1.bf16.msra.mxu0 0
        %338 = vmatprep.subr.bf16.mxu0 0
        %339 = vmatpush1.bf16.msra.mxu0 0
        %340 = vmatprep.subr.bf16.mxu0 0
        %341 = vmatpush1.bf16.msra.mxu0 0
        %342 = vmatprep.subr.bf16.mxu0 0
        %343 = vmatpush1.bf16.msra.mxu0 0
        %344 = vmatprep.subr.bf16.mxu0 0
        %345 = vmatpush1.bf16.msra.mxu0 0
        %346 = vmatprep.subr.bf16.mxu0 0
        %347 = vmatpush1.bf16.msra.mxu0 0
        %348 = vmatprep.subr.bf16.mxu0 0
        %349 = vmatpush1.bf16.msra.mxu0 0
        %350 = vmatprep.mubr.bf16.mxu0 0
        %351 = vmatmul.mubr.bf16.gmra.mrb[0].mxu0 %v316
        %v352 = vpop.f32.mrb[0].mxu0
        %v353 = vadd.f32 0.0, %v352
        %v354 = vpop.f32.mrb[0].mxu0
        %v355 = vadd.f32 0.0, %v354
        %v356 = vpop.f32.mrb[0].mxu0
        %v357 = vadd.f32 0.0, %v356
        %v358 = vpop.f32.mrb[0].mxu0
        %v359 = vadd.f32 0.0, %v358
        %360 = vdwg.mxu0
        %v369 = vunpack.c.l.b16 %v215
        %v370 = vunpack.c.h.b16 %v215
        %v371 = vunpack.c.l.b16 %v216
        %v372 = vunpack.c.h.b16 %v216
        %v373 = vunpack.c.l.b16 %v217
        %v374 = vunpack.c.h.b16 %v217
        %v375 = vunpack.c.l.b16 %v218
        %v376 = vunpack.c.h.b16 %v218
        %v377 = vunpack.c.l.b16 %v219
        %v378 = vunpack.c.h.b16 %v219
        %v379 = vunpack.c.l.b16 %v220
        %v380 = vunpack.c.h.b16 %v220
        %v381 = vunpack.c.l.b16 %v221
        %v382 = vunpack.c.h.b16 %v221
        %v383 = vunpack.c.l.b16 %v222
        %v384 = vunpack.c.h.b16 %v222
        %v385 = vpack.c.b16 %v371, %v369
        %v386 = vpack.c.b16 %v372, %v370
        %v387 = vpack.c.b16 %v375, %v373
        %v388 = vpack.c.b16 %v376, %v374
        %v389 = vpack.c.b16 %v379, %v377
        %v390 = vpack.c.b16 %v380, %v378
        %v391 = vpack.c.b16 %v383, %v381
        %v392 = vpack.c.b16 %v384, %v382
        %v401 = vsel %vm314, %v259, 0
        %403 = vmatprep.subr.bf16.mxu0 %v386
        %404 = vmatpush1.bf16.msra.mxu0 %v385
        %405 = vmatprep.subr.bf16.mxu0 %v388
        %406 = vmatpush1.bf16.msra.mxu0 %v387
        %407 = vmatprep.subr.bf16.mxu0 %v390
        %408 = vmatpush1.bf16.msra.mxu0 %v389
        %409 = vmatprep.subr.bf16.mxu0 %v392
        %410 = vmatpush1.bf16.msra.mxu0 %v391
        %411 = vmatprep.subr.bf16.mxu0 0
        %412 = vmatpush1.bf16.msra.mxu0 0
        %413 = vmatprep.subr.bf16.mxu0 0
        %414 = vmatpush1.bf16.msra.mxu0 0
        %415 = vmatprep.subr.bf16.mxu0 0
        %416 = vmatpush1.bf16.msra.mxu0 0
        %417 = vmatprep.subr.bf16.mxu0 0
        %418 = vmatpush1.bf16.msra.mxu0 0
        %419 = vmatprep.subr.bf16.mxu0 0
        %420 = vmatpush1.bf16.msra.mxu0 0
        %421 = vmatprep.subr.bf16.mxu0 0
        %422 = vmatpush1.bf16.msra.mxu0 0
        %423 = vmatprep.subr.bf16.mxu0 0
        %424 = vmatpush1.bf16.msra.mxu0 0
        %425 = vmatprep.subr.bf16.mxu0 0
        %426 = vmatpush1.bf16.msra.mxu0 0
        %427 = vmatprep.subr.bf16.mxu0 0
        %428 = vmatpush1.bf16.msra.mxu0 0
        %429 = vmatprep.subr.bf16.mxu0 0
        %430 = vmatpush1.bf16.msra.mxu0 0
        %431 = vmatprep.subr.bf16.mxu0 0
        %432 = vmatpush1.bf16.msra.mxu0 0
        %433 = vmatprep.subr.bf16.mxu0 0
        %434 = vmatpush1.bf16.msra.mxu0 0
        %435 = vmatprep.mubr.bf16.mxu0 0
        %436 = vmatmul.mubr.bf16.gmra.mrb[0].mxu0 %v401
        %v437 = vpop.f32.mrb[0].mxu0
        %v438 = vadd.f32 %v353, %v437
        %v439 = vpop.f32.mrb[0].mxu0
        %v440 = vadd.f32 %v355, %v439
        %v441 = vpop.f32.mrb[0].mxu0
        %v442 = vadd.f32 %v357, %v441
        %v443 = vpop.f32.mrb[0].mxu0
        %v444 = vadd.f32 %v359, %v443
        %445 = vdwg.mxu0
        %v447 = vlaneseq
        %v448 = vshrl.u32 %v447, 7
        %v449 = vsub.s32 0, %v448
        %v450 = vrot.slane %v214, %v449
        %v451 = vlaneseq
        %v452 = vshrl.u32 %v451, 7
        %v453 = vsub.s32 1, %v452
        %v454 = vrot.slane %v214, %v453
        %v457 = vadd.f32 %v438, %v450
        %v458 = vadd.f32 %v440, %v454
        %v459 = vadd.f32 %v442, %v450
        %v460 = vadd.f32 %v444, %v454
        %v461 = vmax.f32 %v457, 0.0
        %v462 = vmax.f32 %v458, 0.0
        %v463 = vmax.f32 %v459, 0.0
        %v464 = vmax.f32 %v460, 0.0
        %465 = vst [vmem:[%s202] sm:$0xff] %v461
        %466 = vst [vmem:[%s202 + $0x8] sm:$0xff] %v462
        %467 = vst [vmem:[%s202 + $0x10] sm:$0xff] %v463
        %468 = vst [vmem:[%s202 + $0x18] sm:$0xff] %v464
        %v469 = vld [vmem:[%s211] sm:$0xf]
        %v470 = vld [vmem:[%s211 + $0x4] sm:$0xf]
        %v471 = vld [vmem:[%s211 + $0x8] sm:$0x1]
        %v472 = vld [vmem:[%s211] sm:$0xe]
        %v476 = vunpack.c.l.b16 %v472
        %v477 = vunpack.c.l.b16 %v470
        %v478 = vunpack.c.l.b16 %v471
        %v479 = vpack.c.b16 %v477, %v476
        %v480 = vpack.c.b16 %v478, %v478
        %vm481 = vcmask 1046528
        %v482 = vrot.slane %v479, 1
        %v483 = vrot.slane %v480, 1
        %v484 = vsel %vm481, %v482, %v483
        %v493 = vunpack.c.l.b16 %v242
        %v494 = vunpack.c.h.b16 %v242
        %v495 = vunpack.c.l.b16 %v243
        %v496 = vunpack.c.h.b16 %v243
        %v497 = vunpack.c.l.b16 %v244
        %v498 = vunpack.c.h.b16 %v244
        %v499 = vunpack.c.l.b16 %v245
        %v500 = vunpack.c.h.b16 %v245
        %v501 = vunpack.c.l.b16 %v246
        %v502 = vunpack.c.h.b16 %v246
        %v503 = vunpack.c.l.b16 %v247
        %v504 = vunpack.c.h.b16 %v247
        %v505 = vunpack.c.l.b16 %v248
        %v506 = vunpack.c.h.b16 %v248
        %v507 = vunpack.c.l.b16 %v249
        %v508 = vunpack.c.h.b16 %v249
        %v509 = vpack.c.b16 %v495, %v493
        %v510 = vpack.c.b16 %v496, %v494
        %v511 = vpack.c.b16 %v499, %v497
        %v512 = vpack.c.b16 %v500, %v498
        %v513 = vpack.c.b16 %v503, %v501
        %v514 = vpack.c.b16 %v504, %v502
        %v515 = vpack.c.b16 %v507, %v505
        %v516 = vpack.c.b16 %v508, %v506
        %v526 = vsel %vm314, %v484, 0
        %528 = vmatprep.subr.bf16.mxu0 %v510
        %529 = vmatpush1.bf16.msra.mxu0 %v509
        %530 = vmatprep.subr.bf16.mxu0 %v512
        %531 = vmatpush1.bf16.msra.mxu0 %v511
        %532 = vmatprep.subr.bf16.mxu0 %v514
        %533 = vmatpush1.bf16.msra.mxu0 %v513
        %534 = vmatprep.subr.bf16.mxu0 %v516
        %535 = vmatpush1.bf16.msra.mxu0 %v515
        %536 = vmatprep.subr.bf16.mxu0 0
        %537 = vmatpush1.bf16.msra.mxu0 0
        %538 = vmatprep.subr.bf16.mxu0 0
        %539 = vmatpush1.bf16.msra.mxu0 0
        %540 = vmatprep.subr.bf16.mxu0 0
        %541 = vmatpush1.bf16.msra.mxu0 0
        %542 = vmatprep.subr.bf16.mxu0 0
        %543 = vmatpush1.bf16.msra.mxu0 0
        %544 = vmatprep.subr.bf16.mxu0 0
        %545 = vmatpush1.bf16.msra.mxu0 0
        %546 = vmatprep.subr.bf16.mxu0 0
        %547 = vmatpush1.bf16.msra.mxu0 0
        %548 = vmatprep.subr.bf16.mxu0 0
        %549 = vmatpush1.bf16.msra.mxu0 0
        %550 = vmatprep.subr.bf16.mxu0 0
        %551 = vmatpush1.bf16.msra.mxu0 0
        %552 = vmatprep.subr.bf16.mxu0 0
        %553 = vmatpush1.bf16.msra.mxu0 0
        %554 = vmatprep.subr.bf16.mxu0 0
        %555 = vmatpush1.bf16.msra.mxu0 0
        %556 = vmatprep.subr.bf16.mxu0 0
        %557 = vmatpush1.bf16.msra.mxu0 0
        %558 = vmatprep.subr.bf16.mxu0 0
        %559 = vmatpush1.bf16.msra.mxu0 0
        %560 = vmatprep.mubr.bf16.mxu0 0
        %561 = vmatmul.mubr.bf16.gmra.mrb[0].mxu0 %v526
        %v562 = vpop.f32.mrb[0].mxu0
        %v563 = vadd.f32 0.0, %v562
        %v564 = vpop.f32.mrb[0].mxu0
        %v565 = vadd.f32 0.0, %v564
        %v566 = vpop.f32.mrb[0].mxu0
        %v567 = vadd.f32 0.0, %v566
        %v568 = vpop.f32.mrb[0].mxu0
        %v569 = vadd.f32 0.0, %v568
        %570 = vdwg.mxu0
        %v572 = vunpack.c.l.b16 %v469
        %v573 = vpack.c.b16 %v477, %v572
        %v575 = vshrl.u32 %v573, 16
        %v577 = vshll.u32 %v573, 16
        %v579 = vrot.slane %v577, 1
        %v580 = vor.u32 %v575, %v579
        %v582 = vshll.u32 %v480, 16
        %v584 = vrot.slane %v582, 1
        %v585 = vsel %vm261, %v580, %v584
        %v594 = vunpack.c.l.b16 %v233
        %v595 = vunpack.c.h.b16 %v233
        %v596 = vunpack.c.l.b16 %v234
        %v597 = vunpack.c.h.b16 %v234
        %v598 = vunpack.c.l.b16 %v235
        %v599 = vunpack.c.h.b16 %v235
        %v600 = vunpack.c.l.b16 %v236
        %v601 = vunpack.c.h.b16 %v236
        %v602 = vunpack.c.l.b16 %v237
        %v603 = vunpack.c.h.b16 %v237
        %v604 = vunpack.c.l.b16 %v238
        %v605 = vunpack.c.h.b16 %v238
        %v606 = vunpack.c.l.b16 %v239
        %v607 = vunpack.c.h.b16 %v239
        %v608 = vunpack.c.l.b16 %v240
        %v609 = vunpack.c.h.b16 %v240
        %v610 = vpack.c.b16 %v596, %v594
        %v611 = vpack.c.b16 %v597, %v595
        %v612 = vpack.c.b16 %v600, %v598
        %v613 = vpack.c.b16 %v601, %v599
        %v614 = vpack.c.b16 %v604, %v602
        %v615 = vpack.c.b16 %v605, %v603
        %v616 = vpack.c.b16 %v608, %v606
        %v617 = vpack.c.b16 %v609, %v607
        %v627 = vsel %vm314, %v585, 0
        %629 = vmatprep.subr.bf16.mxu0 %v611
        %630 = vmatpush1.bf16.msra.mxu0 %v610
        %631 = vmatprep.subr.bf16.mxu0 %v613
        %632 = vmatpush1.bf16.msra.mxu0 %v612
        %633 = vmatprep.subr.bf16.mxu0 %v615
        %634 = vmatpush1.bf16.msra.mxu0 %v614
        %635 = vmatprep.subr.bf16.mxu0 %v617
        %636 = vmatpush1.bf16.msra.mxu0 %v616
        %637 = vmatprep.subr.bf16.mxu0 0
        %638 = vmatpush1.bf16.msra.mxu0 0
        %639 = vmatprep.subr.bf16.mxu0 0
        %640 = vmatpush1.bf16.msra.mxu0 0
        %641 = vmatprep.subr.bf16.mxu0 0
        %642 = vmatpush1.bf16.msra.mxu0 0
        %643 = vmatprep.subr.bf16.mxu0 0
        %644 = vmatpush1.bf16.msra.mxu0 0
        %645 = vmatprep.subr.bf16.mxu0 0
        %646 = vmatpush1.bf16.msra.mxu0 0
        %647 = vmatprep.subr.bf16.mxu0 0
        %648 = vmatpush1.bf16.msra.mxu0 0
        %649 = vmatprep.subr.bf16.mxu0 0
        %650 = vmatpush1.bf16.msra.mxu0 0
        %651 = vmatprep.subr.bf16.mxu0 0
        %652 = vmatpush1.bf16.msra.mxu0 0
        %653 = vmatprep.subr.bf16.mxu0 0
        %654 = vmatpush1.bf16.msra.mxu0 0
        %655 = vmatprep.subr.bf16.mxu0 0
        %656 = vmatpush1.bf16.msra.mxu0 0
        %657 = vmatprep.subr.bf16.mxu0 0
        %658 = vmatpush1.bf16.msra.mxu0 0
        %659 = vmatprep.subr.bf16.mxu0 0
        %660 = vmatpush1.bf16.msra.mxu0 0
        %661 = vmatprep.mubr.bf16.mxu0 0
        %662 = vmatmul.mubr.bf16.gmra.mrb[0].mxu0 %v627
        %v663 = vpop.f32.mrb[0].mxu0
        %v664 = vadd.f32 %v563, %v663
        %v665 = vpop.f32.mrb[0].mxu0
        %v666 = vadd.f32 %v565, %v665
        %v667 = vpop.f32.mrb[0].mxu0
        %v668 = vadd.f32 %v567, %v667
        %v669 = vpop.f32.mrb[0].mxu0
        %v670 = vadd.f32 %v569, %v669
        %671 = vdwg.mxu0
        %v672 = vadd.f32 %v664, %v450
        %v673 = vadd.f32 %v666, %v454
        %v674 = vadd.f32 %v668, %v450
        %v675 = vadd.f32 %v670, %v454
        %v676 = vmax.f32 %v672, 0.0
        %v677 = vmax.f32 %v673, 0.0
        %v678 = vmax.f32 %v674, 0.0
        %v679 = vmax.f32 %v675, 0.0
        %s680 = scalar_lea.vmem %s202, 32 [#allocation5]
        %681 = vst [vmem:[%s680] sm:$0xff] %v676
        %682 = vst [vmem:[%s680 + $0x8] sm:$0xff] %v677
        %683 = vst [vmem:[%s680 + $0x10] sm:$0xff] %v678
        %684 = vst [vmem:[%s680 + $0x18] sm:$0xff] %v679
        %s685 = sand.u32 %s110, 1
        %s686 = scalar_lea.sflag [#allocation4], %s685
        %s687 = sand.u32 %s110, 1
        %s688 = smul.addr %s687, 64
        %s689 = scalar_lea.vmem [#allocation5], %s688
        // Predicated region
        $region37: #{tpu_custom_call.1} parent=31 // pred_check
          %p690 = pneg %p120
        $region38: #{tpu_custom_call.1} parent=31 // pred_check_branch
          %692 = sbr.rel (%p690) target = $region40
        $region39: #{tpu_custom_call.1} parent=31 // pred_region
          %s693 = smul.u32 2, %s23
          %s695 = ssub.s32 1024, 1024
          %696 = vsyncadd %s686, %s695
          %s697 = smul.addr %s693, 2
          %s698 = smul.addr %s22, 8
          %s699 = sadd.s32 %s697, %s698
          %s700 = smul.addr %s699, 128
          %s701 = scalar_lea.hbm %s3, %s700
          %s702 = sshll.u32 %s689, 4
          %s703 = int_to_ptr.vmem [resolvable:$true] %s702
          %708 = dma.vmem_to_hbm [thread:$0]  %s703, 1024, %s701, %s686, 256, 256, 16
        $region40: #{tpu_custom_call.1} parent=31 // pred_fallthru
          _
      $region32: #{tpu_custom_call.1} parent=5 // pred_fallthru
        _
      %p709 = scmp.le.s32.totalorder 2, %s13
      // Predicated region
      $region41: #{tpu_custom_call.1} parent=5 // pred_check
        %p710 = pneg %p709
      $region42: #{tpu_custom_call.1} parent=5 // pred_check_branch
        %712 = sbr.rel (%p710) target = $region44
      $region43: #{tpu_custom_call.1} parent=5 // pred_region
        %s713 = ssub.s32 %s13, 2
        // Predicated region
        $region45: #{tpu_custom_call.1} parent=43 // pred_check
          %p714 = pneg %p126
        $region46: #{tpu_custom_call.1} parent=43 // pred_check_branch
          %716 = sbr.rel (%p714) target = $region48
        $region47: #{tpu_custom_call.1} parent=43 // pred_region
          %s717 = sand.u32 %s111, 1
          %s718 = scalar_lea.sflag [#allocation4], %s717
          %s719 = sand.u32 %s111, 1
          %s720 = smul.addr %s719, 64
          %s721 = scalar_lea.vmem [#allocation5], %s720
          %722 = dma.done %s718, 1024
        $region48: #{tpu_custom_call.1} parent=43 // pred_fallthru
          _
      $region44: #{tpu_custom_call.1} parent=5 // pred_fallthru
        _
    $region6: #{tpu_custom_call.1} parent=1 // loop_footer
      %s17 = sadd.s32 1, %s13
    $region7: #{tpu_custom_call.1} parent=1 // loop_footer_branch
      %12 = sbr.rel target = $region3
    $region8: #{tpu_custom_call.1} parent=1 // loop_exit
      _
    %723 = vsyncpa [#allocation3], 1
    %s724 = scalar_lea.sflag [#allocation3], 1
    %725 = vsyncpa %s724, 1
    %726 = vsyncpa [#allocation4], 1
    %s727 = scalar_lea.sflag [#allocation4], 1
    %728 = vsyncpa %s727, 1

</llo_original>
